<compile_context>
chip_gen: v7x
topology: tpu7x:2x2x1
jax: 0.10.0
libtpu: 0.0.40
codegen_flags: <defaults>
</compile_context>

<pallas_src>
import functools

import numpy as np
import jax
import jax.numpy as jnp
from jax import lax
from jax.experimental import pallas as pl
from jax.experimental.pallas import tpu as pltpu

# -------------------------- static network geometry ------------------------- #
H_IN = W_IN = 28          # input image
KH = KW = 5               # conv kernel size
C1, C2 = 6, 12            # conv1 / conv2 output channels
H1, W1 = 24, 24           # conv1 output spatial
HP1, WP1 = 12, 12         # pool1 output spatial
H2, W2 = 8, 8             # conv2 output spatial
HP2, WP2 = 4, 4           # pool2 output spatial
NPAD = 128                # lane-dense padded width for FC layers / final store
B_TILE_MAX = 16           # images per grid step (stacked along the MXU M axis)

_WEIGHT_ORDER = ("T1", "b1", "CE1", "CO1",
                 "T2", "b2", "CE2", "CO2",
                 "Wf1", "bf1", "Wf2", "bf2", "Wout", "bout")


# --------------------------- host-side weight packing ----------------------- #
def pack_params(params):
    """Repack PyTorch-style parameters into MXU/VPU-friendly matrices (run once).

    Activation layouts used by the kernel (per batch tile of B images):
      conv1 act : (B*24, 144)  column index co*24 + x
      pool1     : (B, 12, 72)  column index co*12 + x
      conv2 act : (B*8,   96)  column index d*8   + x
      pool2     : 4 x (B, 48)  column index d*4   + x     (one piece per output row)
    """
    w1 = np.asarray(params["conv1_w"], np.float32)   # (6, 1, 5, 5)
    b1 = np.asarray(params["conv1_b"], np.float32)   # (6,)
    w2 = np.asarray(params["conv2_w"], np.float32)   # (12, 6, 5, 5)
    b2 = np.asarray(params["conv2_b"], np.float32)   # (12,)
    wf1 = np.asarray(params["fc1_w"], np.float32)    # (120, 192)
    bf1 = np.asarray(params["fc1_b"], np.float32)    # (120,)
    wf2 = np.asarray(params["fc2_w"], np.float32)    # (60, 120)
    bf2 = np.asarray(params["fc2_b"], np.float32)    # (60,)
    wo = np.asarray(params["out_w"], np.float32)     # (10, 60)
    bo = np.asarray(params["out_b"], np.float32)     # (10,)

    # conv1 Toeplitz, fused over ky (single wide-K matmul):
    #   Z1[(b,y), co*24+x] = sum_{ky,u} img[b, y+ky, u] * T1[ky*28 + u, co*24 + x]
    T1 = np.zeros((KH * W_IN, C1 * W1), np.float32)
    for ky in range(KH):
        for co in range(C1):
            for x in range(W1):
                for kx in range(KW):
                    T1[ky * W_IN + x + kx, co * W1 + x] = w1[co, 0, ky, kx]
    b1big = np.zeros((1, C1 * W1), np.float32)
    for co in range(C1):
        b1big[0, co * W1:(co + 1) * W1] = b1[co]

    # pool1 column-pair selectors (right-side matmuls, M-agnostic)
    CE1 = np.zeros((C1 * W1, C1 * WP1), np.float32)
    CO1 = np.zeros((C1 * W1, C1 * WP1), np.float32)
    for co in range(C1):
        for xo in range(WP1):
            CE1[co * W1 + 2 * xo, co * WP1 + xo] = 1.0
            CO1[co * W1 + 2 * xo + 1, co * WP1 + xo] = 1.0

    # conv2 Toeplitz, fused over ky:
    #   Z2[(b,y), d*8+x] = sum_{ky,col} P1[b, y+ky, col] * T2[ky*72 + col, d*8 + x]
    T2 = np.zeros((KH * C1 * WP1, C2 * W2), np.float32)
    for ky in range(KH):
        for d in range(C2):
            for c in range(C1):
                for x in range(W2):
                    for kx in range(KW):
                        T2[ky * (C1 * WP1) + c * WP1 + x + kx, d * W2 + x] = w2[d, c, ky, kx]
    b2big = np.zeros((1, C2 * W2), np.float32)
    for d in range(C2):
        b2big[0, d * W2:(d + 1) * W2] = b2[d]

    # pool2 column-pair selectors
    CE2 = np.zeros((C2 * W2, C2 * WP2), np.float32)
    CO2 = np.zeros((C2 * W2, C2 * WP2), np.float32)
    for d in range(C2):
        for xo in range(WP2):
            CE2[d * W2 + 2 * xo, d * WP2 + xo] = 1.0
            CO2[d * W2 + 2 * xo + 1, d * WP2 + xo] = 1.0

    # fc1: kernel presents the flattened features as f = yo*48 + d*4 + xo (lane-concat
    # of the 4 pooled rows); PyTorch flatten index is k = d*16 + yo*4 + xo.  Fold the
    # permutation into Wf1 and zero-pad the output features to 128 lanes.
    Wf1 = np.zeros((HP2 * C2 * WP2, NPAD), np.float32)          # (192, 128)
    for yo in range(HP2):
        for d in range(C2):
            for xo in range(WP2):
                f = yo * (C2 * WP2) + d * WP2 + xo
                k = d * (HP2 * WP2) + yo * WP2 + xo
                Wf1[f, :120] = wf1[:, k]
    bf1p = np.zeros((1, NPAD), np.float32)
    bf1p[0, :120] = bf1

    Wf2 = np.zeros((NPAD, NPAD), np.float32)
    Wf2[:120, :60] = wf2.T
    bf2p = np.zeros((1, NPAD), np.float32)
    bf2p[0, :60] = bf2

    Wout = np.zeros((NPAD, NPAD), np.float32)
    Wout[:60, :10] = wo.T
    boutp = np.zeros((1, NPAD), np.float32)
    boutp[0, :10] = bo

    packed = {
        "T1": T1, "b1": b1big, "CE1": CE1, "CO1": CO1,
        "T2": T2, "b2": b2big, "CE2": CE2, "CO2": CO2,
        "Wf1": Wf1, "bf1": bf1p, "Wf2": Wf2, "bf2": bf2p, "Wout": Wout, "bout": boutp,
    }
    return {k: jnp.asarray(v) for k, v in packed.items()}


# --------------------------------- kernel ----------------------------------- #
def _lenet_fused_kernel(x_ref,
                        t1_ref, b1_ref, ce1_ref, co1_ref,
                        t2_ref, b2_ref, ce2_ref, co2_ref,
                        wf1_ref, bf1_ref, wf2_ref, bf2_ref, wo_ref, bo_ref,
                        out_ref,
                        cp1_scr, p1_scr, cp2_scr):
    b = x_ref.shape[0]                       # images in this batch tile (static)
    dot = functools.partial(jnp.dot, preferred_element_type=jnp.float32)

    # ---- conv1 + bias + ReLU: single wide-K matmul (im2col folded into T1) ----
    xw = jnp.concatenate([x_ref[:, ky:ky + H1, :] for ky in range(KH)], axis=-1)   # (B,24,140)
    a1 = jnp.maximum(dot(xw.reshape(b * H1, KH * W_IN), t1_ref[...]) + b1_ref[...],
                     0.0)                                                           # (B*24,144)

    # ---- pool1: column-pair max (selector matmuls) then row-pair max (VPU) ----
    cp1 = jnp.maximum(dot(a1, ce1_ref[...]), dot(a1, co1_ref[...]))                 # (B*24, 72)
    cp1_scr[...] = cp1.reshape(b, H1, C1 * WP1)                                     # layout-free
    for r in range(HP1):
        p1_scr[:, r, :] = jnp.maximum(cp1_scr[:, 2 * r, :], cp1_scr[:, 2 * r + 1, :])

    # ---- conv2 + bias + ReLU: single wide-K matmul ----
    p1w = jnp.concatenate([p1_scr[:, ky:ky + H2, :] for ky in range(KH)], axis=-1)  # (B,8,360)
    a2 = jnp.maximum(dot(p1w.reshape(b * H2, KH * C1 * WP1), t2_ref[...]) + b2_ref[...],
                     0.0)                                                           # (B*8, 96)

    # ---- pool2 ----
    cp2 = jnp.maximum(dot(a2, ce2_ref[...]), dot(a2, co2_ref[...]))                 # (B*8, 48)
    cp2_scr[...] = cp2.reshape(b, H2, C2 * WP2)                                     # layout-free
    p2_rows = [jnp.maximum(cp2_scr[:, 2 * r, :], cp2_scr[:, 2 * r + 1, :])
               for r in range(HP2)]                                                 # 4 x (B, 48)

    # ---- flatten (folded into Wf1) + fc1 + fc2 + out, all lane-padded to 128 ----
    flat = jnp.concatenate(p2_rows, axis=-1)                                        # (B, 192)
    h1 = jnp.maximum(dot(flat, wf1_ref[...]) + bf1_ref[...], 0.0)                   # (B, 128)
    h2 = jnp.maximum(dot(h1, wf2_ref[...]) + bf2_ref[...], 0.0)                     # (B, 128)
    out_ref[...] = dot(h2, wo_ref[...]) + bo_ref[...]                               # (B, 128)


# --------------------------------- wrapper ---------------------------------- #
def _const_spec(arr):
    zeros = (0,) * arr.ndim
    return pl.BlockSpec(arr.shape, lambda i, _z=zeros: _z)


@jax.jit
def network_forward(x, packed_params):
    """x: (N, 1, 28, 28) float32, packed_params from pack_params() -> (N, 10)."""
    n = x.shape[0]
    b_tile = min(B_TILE_MAX, n)                       # stacked M = 24*b_tile per conv
    n_pad = ((n + b_tile - 1) // b_tile) * b_tile

    ximg = x.astype(jnp.float32).reshape(n, H_IN, W_IN)
    if n_pad != n:
        ximg = jnp.pad(ximg, ((0, n_pad - n), (0, 0), (0, 0)))

    weights = [packed_params[k] for k in _WEIGHT_ORDER]

    out = pl.pallas_call(
        _lenet_fused_kernel,
        grid=(n_pad // b_tile,),
        out_shape=jax.ShapeDtypeStruct((n_pad, NPAD), jnp.float32),
        in_specs=[pl.BlockSpec((b_tile, H_IN, W_IN), lambda i: (i, 0, 0))]
                 + [_const_spec(w) for w in weights],
        out_specs=pl.BlockSpec((b_tile, NPAD), lambda i: (i, 0)),
        scratch_shapes=[pltpu.VMEM((b_tile, H1, C1 * WP1), jnp.float32),   # col-pooled conv1
                        pltpu.VMEM((b_tile, HP1, C1 * WP1), jnp.float32),  # pool1 output
                        pltpu.VMEM((b_tile, H2, C2 * WP2), jnp.float32)],  # col-pooled conv2
        compiler_params=pltpu.CompilerParams(
            dimension_semantics=("parallel",),
            vmem_limit_bytes=32 * 1024 * 1024),
    )(ximg, *weights)

    # Narrow back to the logical (N, 10) output only at the very end.
    return out[:n, :10]


# ------------------------- pure-JAX reference (checking) -------------------- #
def _reference_forward(x, params):
    conv = functools.partial(lax.conv_general_dilated, window_strides=(1, 1),
                             padding="VALID",
                             dimension_numbers=("NCHW", "OIHW", "NCHW"),
                             precision=lax.Precision.HIGHEST)

    def pool(a):
        n, c, h, w = a.shape
        return a.reshape(n, c, h // 2, 2, w // 2, 2).max(axis=(3, 5))

    a = conv(x, params["conv1_w"]) + params["conv1_b"][None, :, None, None]
    a = pool(jax.nn.relu(a))
    a = conv(a, params["conv2_w"]) + params["conv2_b"][None, :, None, None]
    a = pool(jax.nn.relu(a))
    a = a.reshape(a.shape[0], -1)
    a = jax.nn.relu(a @ params["fc1_w"].T + params["fc1_b"])
    a = jax.nn.relu(a @ params["fc2_w"].T + params["fc2_b"])
    return a @ params["out_w"].T + params["out_b"]


# ----------------------------------- main ------------------------------------ #
if __name__ == "__main__":
    key = jax.random.PRNGKey(0)
    keys = jax.random.split(key, 11)

    def uinit(k, shape, fan_in):
        bound = 1.0 / (fan_in ** 0.5)
        return jax.random.uniform(k, shape, jnp.float32, -bound, bound)

    params = {
        "conv1_w": uinit(keys[0], (6, 1, 5, 5), 1 * 5 * 5),
        "conv1_b": uinit(keys[1], (6,), 1 * 5 * 5),
        "conv2_w": uinit(keys[2], (12, 6, 5, 5), 6 * 5 * 5),
        "conv2_b": uinit(keys[3], (12,), 6 * 5 * 5),
        "fc1_w": uinit(keys[4], (120, 192), 192),
        "fc1_b": uinit(keys[5], (120,), 192),
        "fc2_w": uinit(keys[6], (60, 120), 120),
        "fc2_b": uinit(keys[7], (60,), 120),
        "out_w": uinit(keys[8], (10, 60), 60),
        "out_b": uinit(keys[9], (10,), 60),
    }

    packed = pack_params(params)   # one-time host-side repacking

    # Input must be (N, 1, 28, 28) so the 12*4*4 flatten matches the module.
    x = jax.random.normal(keys[10], (2, 1, 28, 28), jnp.float32)

    y = jax.block_until_ready(network_forward(x, packed))
    assert y.shape == (2, 10) and y.dtype == jnp.float32

    y_ref = jax.block_until_ready(_reference_forward(x, params))
    np.testing.assert_allclose(np.asarray(y), np.asarray(y_ref), rtol=1e-2, atol=1e-2)

    print("KERNEL_OK")
</pallas_src>

<mosaic_0001>
module attributes {stable_mosaic.version = 11 : i64} {
  func.func @_lenet_fused_kernel(%arg0: i32, %arg1: memref<2x28x28xf32, #tpu.memory_space<vmem>>, %arg2: memref<140x144xf32, #tpu.memory_space<vmem>>, %arg3: memref<1x144xf32, #tpu.memory_space<vmem>>, %arg4: memref<144x72xf32, #tpu.memory_space<vmem>>, %arg5: memref<144x72xf32, #tpu.memory_space<vmem>>, %arg6: memref<360x96xf32, #tpu.memory_space<vmem>>, %arg7: memref<1x96xf32, #tpu.memory_space<vmem>>, %arg8: memref<96x48xf32, #tpu.memory_space<vmem>>, %arg9: memref<96x48xf32, #tpu.memory_space<vmem>>, %arg10: memref<192x128xf32, #tpu.memory_space<vmem>>, %arg11: memref<1x128xf32, #tpu.memory_space<vmem>>, %arg12: memref<128x128xf32, #tpu.memory_space<vmem>>, %arg13: memref<1x128xf32, #tpu.memory_space<vmem>>, %arg14: memref<128x128xf32, #tpu.memory_space<vmem>>, %arg15: memref<1x128xf32, #tpu.memory_space<vmem>>, %arg16: memref<2x128xf32, #tpu.memory_space<vmem>>, %arg17: memref<2x24x72xf32, #tpu.memory_space<vmem>>, %arg18: memref<2x12x72xf32, #tpu.memory_space<vmem>>, %arg19: memref<2x8x48xf32, #tpu.memory_space<vmem>>) attributes {dimension_semantics = [#tpu.dimension_semantics<parallel>], iteration_bounds = array<i64: 1>, scalar_prefetch = 0 : i64, scratch_operands = 3 : i64, tpu.core_type = #tpu.core_type<tc>, window_params = [{transform_indices = @transform_0, window_bounds = array<i64: 2, 28, 28>}, {pipeline_mode = #tpu.pipeline_mode<synchronous>, transform_indices = @transform_1, window_bounds = array<i64: 140, 144>}, {pipeline_mode = #tpu.pipeline_mode<synchronous>, transform_indices = @transform_2, window_bounds = array<i64: 1, 144>}, {pipeline_mode = #tpu.pipeline_mode<synchronous>, transform_indices = @transform_3, window_bounds = array<i64: 144, 72>}, {pipeline_mode = #tpu.pipeline_mode<synchronous>, transform_indices = @transform_4, window_bounds = array<i64: 144, 72>}, {pipeline_mode = #tpu.pipeline_mode<synchronous>, transform_indices = @transform_5, window_bounds = array<i64: 360, 96>}, {pipeline_mode = #tpu.pipeline_mode<synchronous>, transform_indices = @transform_6, window_bounds = array<i64: 1, 96>}, {pipeline_mode = #tpu.pipeline_mode<synchronous>, transform_indices = @transform_7, window_bounds = array<i64: 96, 48>}, {pipeline_mode = #tpu.pipeline_mode<synchronous>, transform_indices = @transform_8, window_bounds = array<i64: 96, 48>}, {pipeline_mode = #tpu.pipeline_mode<synchronous>, transform_indices = @transform_9, window_bounds = array<i64: 192, 128>}, {pipeline_mode = #tpu.pipeline_mode<synchronous>, transform_indices = @transform_10, window_bounds = array<i64: 1, 128>}, {pipeline_mode = #tpu.pipeline_mode<synchronous>, transform_indices = @transform_11, window_bounds = array<i64: 128, 128>}, {pipeline_mode = #tpu.pipeline_mode<synchronous>, transform_indices = @transform_12, window_bounds = array<i64: 1, 128>}, {pipeline_mode = #tpu.pipeline_mode<synchronous>, transform_indices = @transform_13, window_bounds = array<i64: 128, 128>}, {pipeline_mode = #tpu.pipeline_mode<synchronous>, transform_indices = @transform_14, window_bounds = array<i64: 1, 128>}, {transform_indices = @transform_15, window_bounds = array<i64: 2, 128>}]} {
    %c0 = arith.constant 0 : index
    %c0_0 = arith.constant 0 : index
    %c0_1 = arith.constant 0 : index
    %0 = vector.load %arg1[%c0, %c0_0, %c0_1] : memref<2x28x28xf32, #tpu.memory_space<vmem>>, vector<2x24x28xf32>
    %c0_2 = arith.constant 0 : index
    %c1 = arith.constant 1 : index
    %c0_3 = arith.constant 0 : index
    %1 = vector.load %arg1[%c0_2, %c1, %c0_3] : memref<2x28x28xf32, #tpu.memory_space<vmem>>, vector<2x24x28xf32>
    %c0_4 = arith.constant 0 : index
    %c2 = arith.constant 2 : index
    %c0_5 = arith.constant 0 : index
    %2 = vector.load %arg1[%c0_4, %c2, %c0_5] : memref<2x28x28xf32, #tpu.memory_space<vmem>>, vector<2x24x28xf32>
    %c0_6 = arith.constant 0 : index
    %c3 = arith.constant 3 : index
    %c0_7 = arith.constant 0 : index
    %3 = vector.load %arg1[%c0_6, %c3, %c0_7] : memref<2x28x28xf32, #tpu.memory_space<vmem>>, vector<2x24x28xf32>
    %c0_8 = arith.constant 0 : index
    %c4 = arith.constant 4 : index
    %c0_9 = arith.constant 0 : index
    %4 = vector.load %arg1[%c0_8, %c4, %c0_9] : memref<2x28x28xf32, #tpu.memory_space<vmem>>, vector<2x24x28xf32>
    %5 = tpu.concatenate %0, %1, %2, %3, %4 in 2 : vector<2x24x28xf32>, vector<2x24x28xf32>, vector<2x24x28xf32>, vector<2x24x28xf32>, vector<2x24x28xf32> -> vector<2x24x140xf32>
    %6 = vector.shape_cast %5 : vector<2x24x140xf32> to vector<48x140xf32>
    %c0_10 = arith.constant 0 : index
    %c0_11 = arith.constant 0 : index
    %7 = vector.load %arg2[%c0_10, %c0_11] : memref<140x144xf32, #tpu.memory_space<vmem>>, vector<140x144xf32>
    %cst = arith.constant dense<0.000000e+00> : vector<48x144xf32>
    %8 = tpu.matmul %6, %7, %cst {dimension_numbers = #tpu.dot_dimension_numbers<[1], [0], [0], [1], [0, 0, 1, 1], [], []>} : vector<48x140xf32>, vector<140x144xf32>, vector<48x144xf32> -> vector<48x144xf32>
    %c0_12 = arith.constant 0 : index
    %c0_13 = arith.constant 0 : index
    %9 = vector.load %arg3[%c0_12, %c0_13] : memref<1x144xf32, #tpu.memory_space<vmem>>, vector<1x144xf32>
    %10 = vector.broadcast %9 : vector<1x144xf32> to vector<48x144xf32>
    %11 = arith.addf %8, %10 : vector<48x144xf32>
    %cst_14 = arith.constant 0.000000e+00 : f32
    %12 = vector.broadcast %cst_14 : f32 to vector<48x144xf32>
    %13 = arith.maximumf %11, %12 : vector<48x144xf32>
    %c0_15 = arith.constant 0 : index
    %c0_16 = arith.constant 0 : index
    %14 = vector.load %arg4[%c0_15, %c0_16] : memref<144x72xf32, #tpu.memory_space<vmem>>, vector<144x72xf32>
    %cst_17 = arith.constant dense<0.000000e+00> : vector<48x72xf32>
    %15 = tpu.matmul %13, %14, %cst_17 {dimension_numbers = #tpu.dot_dimension_numbers<[1], [0], [0], [1], [0, 0, 1, 1], [], []>} : vector<48x144xf32>, vector<144x72xf32>, vector<48x72xf32> -> vector<48x72xf32>
    %c0_18 = arith.constant 0 : index
    %c0_19 = arith.constant 0 : index
    %16 = vector.load %arg5[%c0_18, %c0_19] : memref<144x72xf32, #tpu.memory_space<vmem>>, vector<144x72xf32>
    %cst_20 = arith.constant dense<0.000000e+00> : vector<48x72xf32>
    %17 = tpu.matmul %13, %16, %cst_20 {dimension_numbers = #tpu.dot_dimension_numbers<[1], [0], [0], [1], [0, 0, 1, 1], [], []>} : vector<48x144xf32>, vector<144x72xf32>, vector<48x72xf32> -> vector<48x72xf32>
    %18 = arith.maximumf %15, %17 : vector<48x72xf32>
    %19 = vector.shape_cast %18 : vector<48x72xf32> to vector<2x24x72xf32>
    %c0_21 = arith.constant 0 : index
    %c0_22 = arith.constant 0 : index
    %c0_23 = arith.constant 0 : index
    %20 = vector.load %arg17[%c0_21, %c0_22, %c0_23] : memref<2x24x72xf32, #tpu.memory_space<vmem>>, vector<2x24x72xf32>
    tpu.vector_store %arg17[%c0_21, %c0_22, %c0_23], %19 {strides = array<i32>} : memref<2x24x72xf32, #tpu.memory_space<vmem>>, vector<2x24x72xf32>,
    %c0_24 = arith.constant 0 : index
    %c0_25 = arith.constant 0 : index
    %c0_26 = arith.constant 0 : index
    %21 = vector.load %arg17[%c0_24, %c0_25, %c0_26] : memref<2x24x72xf32, #tpu.memory_space<vmem>>, vector<2x1x72xf32>
    %22 = vector.shape_cast %21 : vector<2x1x72xf32> to vector<2x72xf32>
    %c0_27 = arith.constant 0 : index
    %c1_28 = arith.constant 1 : index
    %c0_29 = arith.constant 0 : index
    %23 = vector.load %arg17[%c0_27, %c1_28, %c0_29] : memref<2x24x72xf32, #tpu.memory_space<vmem>>, vector<2x1x72xf32>
    %24 = vector.shape_cast %23 : vector<2x1x72xf32> to vector<2x72xf32>
    %25 = arith.maximumf %22, %24 : vector<2x72xf32>
    %c0_30 = arith.constant 0 : index
    %c0_31 = arith.constant 0 : index
    %c0_32 = arith.constant 0 : index
    %26 = vector.load %arg18[%c0_30, %c0_31, %c0_32] : memref<2x12x72xf32, #tpu.memory_space<vmem>>, vector<2x1x72xf32>
    %27 = vector.shape_cast %26 : vector<2x1x72xf32> to vector<2x72xf32>
    %28 = vector.shape_cast %25 : vector<2x72xf32> to vector<2x1x72xf32>
    tpu.vector_store %arg18[%c0_30, %c0_31, %c0_32], %28 {strides = array<i32>} : memref<2x12x72xf32, #tpu.memory_space<vmem>>, vector<2x1x72xf32>,
    %c0_33 = arith.constant 0 : index
    %c2_34 = arith.constant 2 : index
    %c0_35 = arith.constant 0 : index
    %29 = vector.load %arg17[%c0_33, %c2_34, %c0_35] : memref<2x24x72xf32, #tpu.memory_space<vmem>>, vector<2x1x72xf32>
    %30 = vector.shape_cast %29 : vector<2x1x72xf32> to vector<2x72xf32>
    %c0_36 = arith.constant 0 : index
    %c3_37 = arith.constant 3 : index
    %c0_38 = arith.constant 0 : index
    %31 = vector.load %arg17[%c0_36, %c3_37, %c0_38] : memref<2x24x72xf32, #tpu.memory_space<vmem>>, vector<2x1x72xf32>
    %32 = vector.shape_cast %31 : vector<2x1x72xf32> to vector<2x72xf32>
    %33 = arith.maximumf %30, %32 : vector<2x72xf32>
    %c0_39 = arith.constant 0 : index
    %c1_40 = arith.constant 1 : index
    %c0_41 = arith.constant 0 : index
    %34 = vector.load %arg18[%c0_39, %c1_40, %c0_41] : memref<2x12x72xf32, #tpu.memory_space<vmem>>, vector<2x1x72xf32>
    %35 = vector.shape_cast %34 : vector<2x1x72xf32> to vector<2x72xf32>
    %36 = vector.shape_cast %33 : vector<2x72xf32> to vector<2x1x72xf32>
    tpu.vector_store %arg18[%c0_39, %c1_40, %c0_41], %36 {strides = array<i32>} : memref<2x12x72xf32, #tpu.memory_space<vmem>>, vector<2x1x72xf32>,
    %c0_42 = arith.constant 0 : index
    %c4_43 = arith.constant 4 : index
    %c0_44 = arith.constant 0 : index
    %37 = vector.load %arg17[%c0_42, %c4_43, %c0_44] : memref<2x24x72xf32, #tpu.memory_space<vmem>>, vector<2x1x72xf32>
    %38 = vector.shape_cast %37 : vector<2x1x72xf32> to vector<2x72xf32>
    %c0_45 = arith.constant 0 : index
    %c5 = arith.constant 5 : index
    %c0_46 = arith.constant 0 : index
    %39 = vector.load %arg17[%c0_45, %c5, %c0_46] : memref<2x24x72xf32, #tpu.memory_space<vmem>>, vector<2x1x72xf32>
    %40 = vector.shape_cast %39 : vector<2x1x72xf32> to vector<2x72xf32>
    %41 = arith.maximumf %38, %40 : vector<2x72xf32>
    %c0_47 = arith.constant 0 : index
    %c2_48 = arith.constant 2 : index
    %c0_49 = arith.constant 0 : index
    %42 = vector.load %arg18[%c0_47, %c2_48, %c0_49] : memref<2x12x72xf32, #tpu.memory_space<vmem>>, vector<2x1x72xf32>
    %43 = vector.shape_cast %42 : vector<2x1x72xf32> to vector<2x72xf32>
    %44 = vector.shape_cast %41 : vector<2x72xf32> to vector<2x1x72xf32>
    tpu.vector_store %arg18[%c0_47, %c2_48, %c0_49], %44 {strides = array<i32>} : memref<2x12x72xf32, #tpu.memory_space<vmem>>, vector<2x1x72xf32>,
    %c0_50 = arith.constant 0 : index
    %c6 = arith.constant 6 : index
    %c0_51 = arith.constant 0 : index
    %45 = vector.load %arg17[%c0_50, %c6, %c0_51] : memref<2x24x72xf32, #tpu.memory_space<vmem>>, vector<2x1x72xf32>
    %46 = vector.shape_cast %45 : vector<2x1x72xf32> to vector<2x72xf32>
    %c0_52 = arith.constant 0 : index
    %c7 = arith.constant 7 : index
    %c0_53 = arith.constant 0 : index
    %47 = vector.load %arg17[%c0_52, %c7, %c0_53] : memref<2x24x72xf32, #tpu.memory_space<vmem>>, vector<2x1x72xf32>
    %48 = vector.shape_cast %47 : vector<2x1x72xf32> to vector<2x72xf32>
    %49 = arith.maximumf %46, %48 : vector<2x72xf32>
    %c0_54 = arith.constant 0 : index
    %c3_55 = arith.constant 3 : index
    %c0_56 = arith.constant 0 : index
    %50 = vector.load %arg18[%c0_54, %c3_55, %c0_56] : memref<2x12x72xf32, #tpu.memory_space<vmem>>, vector<2x1x72xf32>
    %51 = vector.shape_cast %50 : vector<2x1x72xf32> to vector<2x72xf32>
    %52 = vector.shape_cast %49 : vector<2x72xf32> to vector<2x1x72xf32>
    tpu.vector_store %arg18[%c0_54, %c3_55, %c0_56], %52 {strides = array<i32>} : memref<2x12x72xf32, #tpu.memory_space<vmem>>, vector<2x1x72xf32>,
    %c0_57 = arith.constant 0 : index
    %c8 = arith.constant 8 : index
    %c0_58 = arith.constant 0 : index
    %53 = vector.load %arg17[%c0_57, %c8, %c0_58] : memref<2x24x72xf32, #tpu.memory_space<vmem>>, vector<2x1x72xf32>
    %54 = vector.shape_cast %53 : vector<2x1x72xf32> to vector<2x72xf32>
    %c0_59 = arith.constant 0 : index
    %c9 = arith.constant 9 : index
    %c0_60 = arith.constant 0 : index
    %55 = vector.load %arg17[%c0_59, %c9, %c0_60] : memref<2x24x72xf32, #tpu.memory_space<vmem>>, vector<2x1x72xf32>
    %56 = vector.shape_cast %55 : vector<2x1x72xf32> to vector<2x72xf32>
    %57 = arith.maximumf %54, %56 : vector<2x72xf32>
    %c0_61 = arith.constant 0 : index
    %c4_62 = arith.constant 4 : index
    %c0_63 = arith.constant 0 : index
    %58 = vector.load %arg18[%c0_61, %c4_62, %c0_63] : memref<2x12x72xf32, #tpu.memory_space<vmem>>, vector<2x1x72xf32>
    %59 = vector.shape_cast %58 : vector<2x1x72xf32> to vector<2x72xf32>
    %60 = vector.shape_cast %57 : vector<2x72xf32> to vector<2x1x72xf32>
    tpu.vector_store %arg18[%c0_61, %c4_62, %c0_63], %60 {strides = array<i32>} : memref<2x12x72xf32, #tpu.memory_space<vmem>>, vector<2x1x72xf32>,
    %c0_64 = arith.constant 0 : index
    %c10 = arith.constant 10 : index
    %c0_65 = arith.constant 0 : index
    %61 = vector.load %arg17[%c0_64, %c10, %c0_65] : memref<2x24x72xf32, #tpu.memory_space<vmem>>, vector<2x1x72xf32>
    %62 = vector.shape_cast %61 : vector<2x1x72xf32> to vector<2x72xf32>
    %c0_66 = arith.constant 0 : index
    %c11 = arith.constant 11 : index
    %c0_67 = arith.constant 0 : index
    %63 = vector.load %arg17[%c0_66, %c11, %c0_67] : memref<2x24x72xf32, #tpu.memory_space<vmem>>, vector<2x1x72xf32>
    %64 = vector.shape_cast %63 : vector<2x1x72xf32> to vector<2x72xf32>
    %65 = arith.maximumf %62, %64 : vector<2x72xf32>
    %c0_68 = arith.constant 0 : index
    %c5_69 = arith.constant 5 : index
    %c0_70 = arith.constant 0 : index
    %66 = vector.load %arg18[%c0_68, %c5_69, %c0_70] : memref<2x12x72xf32, #tpu.memory_space<vmem>>, vector<2x1x72xf32>
    %67 = vector.shape_cast %66 : vector<2x1x72xf32> to vector<2x72xf32>
    %68 = vector.shape_cast %65 : vector<2x72xf32> to vector<2x1x72xf32>
    tpu.vector_store %arg18[%c0_68, %c5_69, %c0_70], %68 {strides = array<i32>} : memref<2x12x72xf32, #tpu.memory_space<vmem>>, vector<2x1x72xf32>,
    %c0_71 = arith.constant 0 : index
    %c12 = arith.constant 12 : index
    %c0_72 = arith.constant 0 : index
    %69 = vector.load %arg17[%c0_71, %c12, %c0_72] : memref<2x24x72xf32, #tpu.memory_space<vmem>>, vector<2x1x72xf32>
    %70 = vector.shape_cast %69 : vector<2x1x72xf32> to vector<2x72xf32>
    %c0_73 = arith.constant 0 : index
    %c13 = arith.constant 13 : index
    %c0_74 = arith.constant 0 : index
    %71 = vector.load %arg17[%c0_73, %c13, %c0_74] : memref<2x24x72xf32, #tpu.memory_space<vmem>>, vector<2x1x72xf32>
    %72 = vector.shape_cast %71 : vector<2x1x72xf32> to vector<2x72xf32>
    %73 = arith.maximumf %70, %72 : vector<2x72xf32>
    %c0_75 = arith.constant 0 : index
    %c6_76 = arith.constant 6 : index
    %c0_77 = arith.constant 0 : index
    %74 = vector.load %arg18[%c0_75, %c6_76, %c0_77] : memref<2x12x72xf32, #tpu.memory_space<vmem>>, vector<2x1x72xf32>
    %75 = vector.shape_cast %74 : vector<2x1x72xf32> to vector<2x72xf32>
    %76 = vector.shape_cast %73 : vector<2x72xf32> to vector<2x1x72xf32>
    tpu.vector_store %arg18[%c0_75, %c6_76, %c0_77], %76 {strides = array<i32>} : memref<2x12x72xf32, #tpu.memory_space<vmem>>, vector<2x1x72xf32>,
    %c0_78 = arith.constant 0 : index
    %c14 = arith.constant 14 : index
    %c0_79 = arith.constant 0 : index
    %77 = vector.load %arg17[%c0_78, %c14, %c0_79] : memref<2x24x72xf32, #tpu.memory_space<vmem>>, vector<2x1x72xf32>
    %78 = vector.shape_cast %77 : vector<2x1x72xf32> to vector<2x72xf32>
    %c0_80 = arith.constant 0 : index
    %c15 = arith.constant 15 : index
    %c0_81 = arith.constant 0 : index
    %79 = vector.load %arg17[%c0_80, %c15, %c0_81] : memref<2x24x72xf32, #tpu.memory_space<vmem>>, vector<2x1x72xf32>
    %80 = vector.shape_cast %79 : vector<2x1x72xf32> to vector<2x72xf32>
    %81 = arith.maximumf %78, %80 : vector<2x72xf32>
    %c0_82 = arith.constant 0 : index
    %c7_83 = arith.constant 7 : index
    %c0_84 = arith.constant 0 : index
    %82 = vector.load %arg18[%c0_82, %c7_83, %c0_84] : memref<2x12x72xf32, #tpu.memory_space<vmem>>, vector<2x1x72xf32>
    %83 = vector.shape_cast %82 : vector<2x1x72xf32> to vector<2x72xf32>
    %84 = vector.shape_cast %81 : vector<2x72xf32> to vector<2x1x72xf32>
    tpu.vector_store %arg18[%c0_82, %c7_83, %c0_84], %84 {strides = array<i32>} : memref<2x12x72xf32, #tpu.memory_space<vmem>>, vector<2x1x72xf32>,
    %c0_85 = arith.constant 0 : index
    %c16 = arith.constant 16 : index
    %c0_86 = arith.constant 0 : index
    %85 = vector.load %arg17[%c0_85, %c16, %c0_86] : memref<2x24x72xf32, #tpu.memory_space<vmem>>, vector<2x1x72xf32>
    %86 = vector.shape_cast %85 : vector<2x1x72xf32> to vector<2x72xf32>
    %c0_87 = arith.constant 0 : index
    %c17 = arith.constant 17 : index
    %c0_88 = arith.constant 0 : index
    %87 = vector.load %arg17[%c0_87, %c17, %c0_88] : memref<2x24x72xf32, #tpu.memory_space<vmem>>, vector<2x1x72xf32>
    %88 = vector.shape_cast %87 : vector<2x1x72xf32> to vector<2x72xf32>
    %89 = arith.maximumf %86, %88 : vector<2x72xf32>
    %c0_89 = arith.constant 0 : index
    %c8_90 = arith.constant 8 : index
    %c0_91 = arith.constant 0 : index
    %90 = vector.load %arg18[%c0_89, %c8_90, %c0_91] : memref<2x12x72xf32, #tpu.memory_space<vmem>>, vector<2x1x72xf32>
    %91 = vector.shape_cast %90 : vector<2x1x72xf32> to vector<2x72xf32>
    %92 = vector.shape_cast %89 : vector<2x72xf32> to vector<2x1x72xf32>
    tpu.vector_store %arg18[%c0_89, %c8_90, %c0_91], %92 {strides = array<i32>} : memref<2x12x72xf32, #tpu.memory_space<vmem>>, vector<2x1x72xf32>,
    %c0_92 = arith.constant 0 : index
    %c18 = arith.constant 18 : index
    %c0_93 = arith.constant 0 : index
    %93 = vector.load %arg17[%c0_92, %c18, %c0_93] : memref<2x24x72xf32, #tpu.memory_space<vmem>>, vector<2x1x72xf32>
    %94 = vector.shape_cast %93 : vector<2x1x72xf32> to vector<2x72xf32>
    %c0_94 = arith.constant 0 : index
    %c19 = arith.constant 19 : index
    %c0_95 = arith.constant 0 : index
    %95 = vector.load %arg17[%c0_94, %c19, %c0_95] : memref<2x24x72xf32, #tpu.memory_space<vmem>>, vector<2x1x72xf32>
    %96 = vector.shape_cast %95 : vector<2x1x72xf32> to vector<2x72xf32>
    %97 = arith.maximumf %94, %96 : vector<2x72xf32>
    %c0_96 = arith.constant 0 : index
    %c9_97 = arith.constant 9 : index
    %c0_98 = arith.constant 0 : index
    %98 = vector.load %arg18[%c0_96, %c9_97, %c0_98] : memref<2x12x72xf32, #tpu.memory_space<vmem>>, vector<2x1x72xf32>
    %99 = vector.shape_cast %98 : vector<2x1x72xf32> to vector<2x72xf32>
    %100 = vector.shape_cast %97 : vector<2x72xf32> to vector<2x1x72xf32>
    tpu.vector_store %arg18[%c0_96, %c9_97, %c0_98], %100 {strides = array<i32>} : memref<2x12x72xf32, #tpu.memory_space<vmem>>, vector<2x1x72xf32>,
    %c0_99 = arith.constant 0 : index
    %c20 = arith.constant 20 : index
    %c0_100 = arith.constant 0 : index
    %101 = vector.load %arg17[%c0_99, %c20, %c0_100] : memref<2x24x72xf32, #tpu.memory_space<vmem>>, vector<2x1x72xf32>
    %102 = vector.shape_cast %101 : vector<2x1x72xf32> to vector<2x72xf32>
    %c0_101 = arith.constant 0 : index
    %c21 = arith.constant 21 : index
    %c0_102 = arith.constant 0 : index
    %103 = vector.load %arg17[%c0_101, %c21, %c0_102] : memref<2x24x72xf32, #tpu.memory_space<vmem>>, vector<2x1x72xf32>
    %104 = vector.shape_cast %103 : vector<2x1x72xf32> to vector<2x72xf32>
    %105 = arith.maximumf %102, %104 : vector<2x72xf32>
    %c0_103 = arith.constant 0 : index
    %c10_104 = arith.constant 10 : index
    %c0_105 = arith.constant 0 : index
    %106 = vector.load %arg18[%c0_103, %c10_104, %c0_105] : memref<2x12x72xf32, #tpu.memory_space<vmem>>, vector<2x1x72xf32>
    %107 = vector.shape_cast %106 : vector<2x1x72xf32> to vector<2x72xf32>
    %108 = vector.shape_cast %105 : vector<2x72xf32> to vector<2x1x72xf32>
    tpu.vector_store %arg18[%c0_103, %c10_104, %c0_105], %108 {strides = array<i32>} : memref<2x12x72xf32, #tpu.memory_space<vmem>>, vector<2x1x72xf32>,
    %c0_106 = arith.constant 0 : index
    %c22 = arith.constant 22 : index
    %c0_107 = arith.constant 0 : index
    %109 = vector.load %arg17[%c0_106, %c22, %c0_107] : memref<2x24x72xf32, #tpu.memory_space<vmem>>, vector<2x1x72xf32>
    %110 = vector.shape_cast %109 : vector<2x1x72xf32> to vector<2x72xf32>
    %c0_108 = arith.constant 0 : index
    %c23 = arith.constant 23 : index
    %c0_109 = arith.constant 0 : index
    %111 = vector.load %arg17[%c0_108, %c23, %c0_109] : memref<2x24x72xf32, #tpu.memory_space<vmem>>, vector<2x1x72xf32>
    %112 = vector.shape_cast %111 : vector<2x1x72xf32> to vector<2x72xf32>
    %113 = arith.maximumf %110, %112 : vector<2x72xf32>
    %c0_110 = arith.constant 0 : index
    %c11_111 = arith.constant 11 : index
    %c0_112 = arith.constant 0 : index
    %114 = vector.load %arg18[%c0_110, %c11_111, %c0_112] : memref<2x12x72xf32, #tpu.memory_space<vmem>>, vector<2x1x72xf32>
    %115 = vector.shape_cast %114 : vector<2x1x72xf32> to vector<2x72xf32>
    %116 = vector.shape_cast %113 : vector<2x72xf32> to vector<2x1x72xf32>
    tpu.vector_store %arg18[%c0_110, %c11_111, %c0_112], %116 {strides = array<i32>} : memref<2x12x72xf32, #tpu.memory_space<vmem>>, vector<2x1x72xf32>,
    %c0_113 = arith.constant 0 : index
    %c0_114 = arith.constant 0 : index
    %c0_115 = arith.constant 0 : index
    %117 = vector.load %arg18[%c0_113, %c0_114, %c0_115] : memref<2x12x72xf32, #tpu.memory_space<vmem>>, vector<2x8x72xf32>
    %c0_116 = arith.constant 0 : index
    %c1_117 = arith.constant 1 : index
    %c0_118 = arith.constant 0 : index
    %118 = vector.load %arg18[%c0_116, %c1_117, %c0_118] : memref<2x12x72xf32, #tpu.memory_space<vmem>>, vector<2x8x72xf32>
    %c0_119 = arith.constant 0 : index
    %c2_120 = arith.constant 2 : index
    %c0_121 = arith.constant 0 : index
    %119 = vector.load %arg18[%c0_119, %c2_120, %c0_121] : memref<2x12x72xf32, #tpu.memory_space<vmem>>, vector<2x8x72xf32>
    %c0_122 = arith.constant 0 : index
    %c3_123 = arith.constant 3 : index
    %c0_124 = arith.constant 0 : index
    %120 = vector.load %arg18[%c0_122, %c3_123, %c0_124] : memref<2x12x72xf32, #tpu.memory_space<vmem>>, vector<2x8x72xf32>
    %c0_125 = arith.constant 0 : index
    %c4_126 = arith.constant 4 : index
    %c0_127 = arith.constant 0 : index
    %121 = vector.load %arg18[%c0_125, %c4_126, %c0_127] : memref<2x12x72xf32, #tpu.memory_space<vmem>>, vector<2x8x72xf32>
    %122 = tpu.concatenate %117, %118, %119, %120, %121 in 2 : vector<2x8x72xf32>, vector<2x8x72xf32>, vector<2x8x72xf32>, vector<2x8x72xf32>, vector<2x8x72xf32> -> vector<2x8x360xf32>
    %123 = vector.shape_cast %122 : vector<2x8x360xf32> to vector<16x360xf32>
    %c0_128 = arith.constant 0 : index
    %c0_129 = arith.constant 0 : index
    %124 = vector.load %arg6[%c0_128, %c0_129] : memref<360x96xf32, #tpu.memory_space<vmem>>, vector<360x96xf32>
    %cst_130 = arith.constant dense<0.000000e+00> : vector<16x96xf32>
    %125 = tpu.matmul %123, %124, %cst_130 {dimension_numbers = #tpu.dot_dimension_numbers<[1], [0], [0], [1], [0, 0, 1, 1], [], []>} : vector<16x360xf32>, vector<360x96xf32>, vector<16x96xf32> -> vector<16x96xf32>
    %c0_131 = arith.constant 0 : index
    %c0_132 = arith.constant 0 : index
    %126 = vector.load %arg7[%c0_131, %c0_132] : memref<1x96xf32, #tpu.memory_space<vmem>>, vector<1x96xf32>
    %127 = vector.broadcast %126 : vector<1x96xf32> to vector<16x96xf32>
    %128 = arith.addf %125, %127 : vector<16x96xf32>
    %cst_133 = arith.constant 0.000000e+00 : f32
    %129 = vector.broadcast %cst_133 : f32 to vector<16x96xf32>
    %130 = arith.maximumf %128, %129 : vector<16x96xf32>
    %c0_134 = arith.constant 0 : index
    %c0_135 = arith.constant 0 : index
    %131 = vector.load %arg8[%c0_134, %c0_135] : memref<96x48xf32, #tpu.memory_space<vmem>>, vector<96x48xf32>
    %cst_136 = arith.constant dense<0.000000e+00> : vector<16x48xf32>
    %132 = tpu.matmul %130, %131, %cst_136 {dimension_numbers = #tpu.dot_dimension_numbers<[1], [0], [0], [1], [0, 0, 1, 1], [], []>} : vector<16x96xf32>, vector<96x48xf32>, vector<16x48xf32> -> vector<16x48xf32>
    %c0_137 = arith.constant 0 : index
    %c0_138 = arith.constant 0 : index
    %133 = vector.load %arg9[%c0_137, %c0_138] : memref<96x48xf32, #tpu.memory_space<vmem>>, vector<96x48xf32>
    %cst_139 = arith.constant dense<0.000000e+00> : vector<16x48xf32>
    %134 = tpu.matmul %130, %133, %cst_139 {dimension_numbers = #tpu.dot_dimension_numbers<[1], [0], [0], [1], [0, 0, 1, 1], [], []>} : vector<16x96xf32>, vector<96x48xf32>, vector<16x48xf32> -> vector<16x48xf32>
    %135 = arith.maximumf %132, %134 : vector<16x48xf32>
    %136 = vector.shape_cast %135 : vector<16x48xf32> to vector<2x8x48xf32>
    %c0_140 = arith.constant 0 : index
    %c0_141 = arith.constant 0 : index
    %c0_142 = arith.constant 0 : index
    %137 = vector.load %arg19[%c0_140, %c0_141, %c0_142] : memref<2x8x48xf32, #tpu.memory_space<vmem>>, vector<2x8x48xf32>
    tpu.vector_store %arg19[%c0_140, %c0_141, %c0_142], %136 {strides = array<i32>} : memref<2x8x48xf32, #tpu.memory_space<vmem>>, vector<2x8x48xf32>,
    %c0_143 = arith.constant 0 : index
    %c0_144 = arith.constant 0 : index
    %c0_145 = arith.constant 0 : index
    %138 = vector.load %arg19[%c0_143, %c0_144, %c0_145] : memref<2x8x48xf32, #tpu.memory_space<vmem>>, vector<2x1x48xf32>
    %139 = vector.shape_cast %138 : vector<2x1x48xf32> to vector<2x48xf32>
    %c0_146 = arith.constant 0 : index
    %c1_147 = arith.constant 1 : index
    %c0_148 = arith.constant 0 : index
    %140 = vector.load %arg19[%c0_146, %c1_147, %c0_148] : memref<2x8x48xf32, #tpu.memory_space<vmem>>, vector<2x1x48xf32>
    %141 = vector.shape_cast %140 : vector<2x1x48xf32> to vector<2x48xf32>
    %142 = arith.maximumf %139, %141 : vector<2x48xf32>
    %c0_149 = arith.constant 0 : index
    %c2_150 = arith.constant 2 : index
    %c0_151 = arith.constant 0 : index
    %143 = vector.load %arg19[%c0_149, %c2_150, %c0_151] : memref<2x8x48xf32, #tpu.memory_space<vmem>>, vector<2x1x48xf32>
    %144 = vector.shape_cast %143 : vector<2x1x48xf32> to vector<2x48xf32>
    %c0_152 = arith.constant 0 : index
    %c3_153 = arith.constant 3 : index
    %c0_154 = arith.constant 0 : index
    %145 = vector.load %arg19[%c0_152, %c3_153, %c0_154] : memref<2x8x48xf32, #tpu.memory_space<vmem>>, vector<2x1x48xf32>
    %146 = vector.shape_cast %145 : vector<2x1x48xf32> to vector<2x48xf32>
    %147 = arith.maximumf %144, %146 : vector<2x48xf32>
    %c0_155 = arith.constant 0 : index
    %c4_156 = arith.constant 4 : index
    %c0_157 = arith.constant 0 : index
    %148 = vector.load %arg19[%c0_155, %c4_156, %c0_157] : memref<2x8x48xf32, #tpu.memory_space<vmem>>, vector<2x1x48xf32>
    %149 = vector.shape_cast %148 : vector<2x1x48xf32> to vector<2x48xf32>
    %c0_158 = arith.constant 0 : index
    %c5_159 = arith.constant 5 : index
    %c0_160 = arith.constant 0 : index
    %150 = vector.load %arg19[%c0_158, %c5_159, %c0_160] : memref<2x8x48xf32, #tpu.memory_space<vmem>>, vector<2x1x48xf32>
    %151 = vector.shape_cast %150 : vector<2x1x48xf32> to vector<2x48xf32>
    %152 = arith.maximumf %149, %151 : vector<2x48xf32>
    %c0_161 = arith.constant 0 : index
    %c6_162 = arith.constant 6 : index
    %c0_163 = arith.constant 0 : index
    %153 = vector.load %arg19[%c0_161, %c6_162, %c0_163] : memref<2x8x48xf32, #tpu.memory_space<vmem>>, vector<2x1x48xf32>
    %154 = vector.shape_cast %153 : vector<2x1x48xf32> to vector<2x48xf32>
    %c0_164 = arith.constant 0 : index
    %c7_165 = arith.constant 7 : index
    %c0_166 = arith.constant 0 : index
    %155 = vector.load %arg19[%c0_164, %c7_165, %c0_166] : memref<2x8x48xf32, #tpu.memory_space<vmem>>, vector<2x1x48xf32>
    %156 = vector.shape_cast %155 : vector<2x1x48xf32> to vector<2x48xf32>
    %157 = arith.maximumf %154, %156 : vector<2x48xf32>
    %158 = tpu.concatenate %142, %147, %152, %157 in 1 : vector<2x48xf32>, vector<2x48xf32>, vector<2x48xf32>, vector<2x48xf32> -> vector<2x192xf32>
    %c0_167 = arith.constant 0 : index
    %c0_168 = arith.constant 0 : index
    %159 = vector.load %arg10[%c0_167, %c0_168] : memref<192x128xf32, #tpu.memory_space<vmem>>, vector<192x128xf32>
    %cst_169 = arith.constant dense<0.000000e+00> : vector<2x128xf32>
    %160 = tpu.matmul %158, %159, %cst_169 {dimension_numbers = #tpu.dot_dimension_numbers<[1], [0], [0], [1], [0, 0, 1, 1], [], []>} : vector<2x192xf32>, vector<192x128xf32>, vector<2x128xf32> -> vector<2x128xf32>
    %c0_170 = arith.constant 0 : index
    %c0_171 = arith.constant 0 : index
    %161 = vector.load %arg11[%c0_170, %c0_171] : memref<1x128xf32, #tpu.memory_space<vmem>>, vector<1x128xf32>
    %162 = vector.broadcast %161 : vector<1x128xf32> to vector<2x128xf32>
    %163 = arith.addf %160, %162 : vector<2x128xf32>
    %cst_172 = arith.constant 0.000000e+00 : f32
    %164 = vector.broadcast %cst_172 : f32 to vector<2x128xf32>
    %165 = arith.maximumf %163, %164 : vector<2x128xf32>
    %c0_173 = arith.constant 0 : index
    %c0_174 = arith.constant 0 : index
    %166 = vector.load %arg12[%c0_173, %c0_174] : memref<128x128xf32, #tpu.memory_space<vmem>>, vector<128x128xf32>
    %cst_175 = arith.constant dense<0.000000e+00> : vector<2x128xf32>
    %167 = tpu.matmul %165, %166, %cst_175 {dimension_numbers = #tpu.dot_dimension_numbers<[1], [0], [0], [1], [0, 0, 1, 1], [], []>} : vector<2x128xf32>, vector<128x128xf32>, vector<2x128xf32> -> vector<2x128xf32>
    %c0_176 = arith.constant 0 : index
    %c0_177 = arith.constant 0 : index
    %168 = vector.load %arg13[%c0_176, %c0_177] : memref<1x128xf32, #tpu.memory_space<vmem>>, vector<1x128xf32>
    %169 = vector.broadcast %168 : vector<1x128xf32> to vector<2x128xf32>
    %170 = arith.addf %167, %169 : vector<2x128xf32>
    %cst_178 = arith.constant 0.000000e+00 : f32
    %171 = vector.broadcast %cst_178 : f32 to vector<2x128xf32>
    %172 = arith.maximumf %170, %171 : vector<2x128xf32>
    %c0_179 = arith.constant 0 : index
    %c0_180 = arith.constant 0 : index
    %173 = vector.load %arg14[%c0_179, %c0_180] : memref<128x128xf32, #tpu.memory_space<vmem>>, vector<128x128xf32>
    %cst_181 = arith.constant dense<0.000000e+00> : vector<2x128xf32>
    %174 = tpu.matmul %172, %173, %cst_181 {dimension_numbers = #tpu.dot_dimension_numbers<[1], [0], [0], [1], [0, 0, 1, 1], [], []>} : vector<2x128xf32>, vector<128x128xf32>, vector<2x128xf32> -> vector<2x128xf32>
    %c0_182 = arith.constant 0 : index
    %c0_183 = arith.constant 0 : index
    %175 = vector.load %arg15[%c0_182, %c0_183] : memref<1x128xf32, #tpu.memory_space<vmem>>, vector<1x128xf32>
    %176 = vector.broadcast %175 : vector<1x128xf32> to vector<2x128xf32>
    %177 = arith.addf %174, %176 : vector<2x128xf32>
    %c0_184 = arith.constant 0 : index
    %c0_185 = arith.constant 0 : index
    %178 = vector.load %arg16[%c0_184, %c0_185] : memref<2x128xf32, #tpu.memory_space<vmem>>, vector<2x128xf32>
    tpu.vector_store %arg16[%c0_184, %c0_185], %177 {strides = array<i32>} : memref<2x128xf32, #tpu.memory_space<vmem>>, vector<2x128xf32>,
    return
  }
  func.func @transform_0(%arg0: i32) -> (i32, i32, i32) {
    %c0_i32 = arith.constant 0 : i32
    %c0_i32_0 = arith.constant 0 : i32
    %c0_i32_1 = arith.constant 0 : i32
    return %arg0, %c0_i32, %c0_i32_0 : i32, i32, i32
  }
  func.func @transform_1(%arg0: i32) -> (i32, i32) {
    %c0_i32 = arith.constant 0 : i32
    %c0_i32_0 = arith.constant 0 : i32
    %c0_i32_1 = arith.constant 0 : i32
    return %c0_i32, %c0_i32_0 : i32, i32
  }
  func.func @transform_2(%arg0: i32) -> (i32, i32) {
    %c0_i32 = arith.constant 0 : i32
    %c0_i32_0 = arith.constant 0 : i32
    %c0_i32_1 = arith.constant 0 : i32
    return %c0_i32, %c0_i32_0 : i32, i32
  }
  func.func @transform_3(%arg0: i32) -> (i32, i32) {
    %c0_i32 = arith.constant 0 : i32
    %c0_i32_0 = arith.constant 0 : i32
    %c0_i32_1 = arith.constant 0 : i32
    return %c0_i32, %c0_i32_0 : i32, i32
  }
  func.func @transform_4(%arg0: i32) -> (i32, i32) {
    %c0_i32 = arith.constant 0 : i32
    %c0_i32_0 = arith.constant 0 : i32
    %c0_i32_1 = arith.constant 0 : i32
    return %c0_i32, %c0_i32_0 : i32, i32
  }
  func.func @transform_5(%arg0: i32) -> (i32, i32) {
    %c0_i32 = arith.constant 0 : i32
    %c0_i32_0 = arith.constant 0 : i32
    %c0_i32_1 = arith.constant 0 : i32
    return %c0_i32, %c0_i32_0 : i32, i32
  }
  func.func @transform_6(%arg0: i32) -> (i32, i32) {
    %c0_i32 = arith.constant 0 : i32
    %c0_i32_0 = arith.constant 0 : i32
    %c0_i32_1 = arith.constant 0 : i32
    return %c0_i32, %c0_i32_0 : i32, i32
  }
  func.func @transform_7(%arg0: i32) -> (i32, i32) {
    %c0_i32 = arith.constant 0 : i32
    %c0_i32_0 = arith.constant 0 : i32
    %c0_i32_1 = arith.constant 0 : i32
    return %c0_i32, %c0_i32_0 : i32, i32
  }
  func.func @transform_8(%arg0: i32) -> (i32, i32) {
    %c0_i32 = arith.constant 0 : i32
    %c0_i32_0 = arith.constant 0 : i32
    %c0_i32_1 = arith.constant 0 : i32
    return %c0_i32, %c0_i32_0 : i32, i32
  }
  func.func @transform_9(%arg0: i32) -> (i32, i32) {
    %c0_i32 = arith.constant 0 : i32
    %c0_i32_0 = arith.constant 0 : i32
    %c0_i32_1 = arith.constant 0 : i32
    return %c0_i32, %c0_i32_0 : i32, i32
  }
  func.func @transform_10(%arg0: i32) -> (i32, i32) {
    %c0_i32 = arith.constant 0 : i32
    %c0_i32_0 = arith.constant 0 : i32
    %c0_i32_1 = arith.constant 0 : i32
    return %c0_i32, %c0_i32_0 : i32, i32
  }
  func.func @transform_11(%arg0: i32) -> (i32, i32) {
    %c0_i32 = arith.constant 0 : i32
    %c0_i32_0 = arith.constant 0 : i32
    %c0_i32_1 = arith.constant 0 : i32
    return %c0_i32, %c0_i32_0 : i32, i32
  }
  func.func @transform_12(%arg0: i32) -> (i32, i32) {
    %c0_i32 = arith.constant 0 : i32
    %c0_i32_0 = arith.constant 0 : i32
    %c0_i32_1 = arith.constant 0 : i32
    return %c0_i32, %c0_i32_0 : i32, i32
  }
  func.func @transform_13(%arg0: i32) -> (i32, i32) {
    %c0_i32 = arith.constant 0 : i32
    %c0_i32_0 = arith.constant 0 : i32
    %c0_i32_1 = arith.constant 0 : i32
    return %c0_i32, %c0_i32_0 : i32, i32
  }
  func.func @transform_14(%arg0: i32) -> (i32, i32) {
    %c0_i32 = arith.constant 0 : i32
    %c0_i32_0 = arith.constant 0 : i32
    %c0_i32_1 = arith.constant 0 : i32
    return %c0_i32, %c0_i32_0 : i32, i32
  }
  func.func @transform_15(%arg0: i32) -> (i32, i32) {
    %c0_i32 = arith.constant 0 : i32
    %c0_i32_0 = arith.constant 0 : i32
    return %arg0, %c0_i32 : i32, i32
  }
}

</mosaic_0001>

<llo_original>
// kernel: network_forward.1
$region0: #{network_forward.1}
  #allocation0 [shape = 'u32[]', space=smem, size = 0x4, offset = 0x4, fixed_abs, tag = 'smem constant byte address 0x4 - core index']
  #allocation1 [shape = 'u32[144,128]{1,0:T(1,128)}', space=vmem, size = 0x12000, scoped, tag = 'internal scratch']
  #allocation2 [shape = 'f32[2,24,72]{2,1,0:T(8,128)}', space=vmem, size = 0x6000, scoped, tag = 'scratch operand']
  #allocation3 [shape = 'f32[2,12,72]{2,1,0:T(8,128)}', space=vmem, size = 0x4000, scoped, tag = 'scratch operand']
  #allocation4 [shape = 'f32[2,8,48]{2,1,0:T(8,128)}', space=vmem, size = 0x2000, scoped, tag = 'scratch operand']
  %s0 = inlined_call_operand.vmem [shape: f32[2,28,28], index: 0, kind: input, shape index: {}]
  %s1 = inlined_call_operand.vmem [shape: f32[140,144], index: 1, kind: input, shape index: {}]
  %s2 = inlined_call_operand.vmem [shape: f32[1,144], index: 2, kind: input, shape index: {}]
  %s3 = inlined_call_operand.vmem [shape: f32[144,72], index: 3, kind: input, shape index: {}]
  %s4 = inlined_call_operand.vmem [shape: f32[144,72], index: 4, kind: input, shape index: {}]
  %s5 = inlined_call_operand.vmem [shape: f32[360,96], index: 5, kind: input, shape index: {}]
  %s6 = inlined_call_operand.vmem [shape: f32[1,96], index: 6, kind: input, shape index: {}]
  %s7 = inlined_call_operand.vmem [shape: f32[96,48], index: 7, kind: input, shape index: {}]
  %s8 = inlined_call_operand.vmem [shape: f32[96,48], index: 8, kind: input, shape index: {}]
  %s9 = inlined_call_operand.vmem [shape: f32[192,128], index: 9, kind: input, shape index: {}]
  %s10 = inlined_call_operand.vmem [shape: f32[1,128], index: 10, kind: input, shape index: {}]
  %s11 = inlined_call_operand.vmem [shape: f32[128,128], index: 11, kind: input, shape index: {}]
  %s12 = inlined_call_operand.vmem [shape: f32[1,128], index: 12, kind: input, shape index: {}]
  %s13 = inlined_call_operand.hbm [shape: f32[128,128], index: 13, kind: input, shape index: {}]
  %s14 = inlined_call_operand.vmem [shape: f32[1,128], index: 14, kind: input, shape index: {}]
  %s15 = inlined_call_operand.hbm [shape: f32[2,128], index: 15, kind: output, shape index: {}]
  %s16 = sld [smem:[#allocation0]]
  $region74: #{network_forward.1} parent=0
    _
  %s18 = ssub.s32 1, %s16
  %s19 = scalar_select 0, %s18, %s16
  $region1: #{network_forward.1} parent=0
    #allocation5 [shape = 'u8[65536]{0}', space=vmem, size = 0x10000, scoped, tag = 'input window, operand 13, single buffered']
    #allocation6 [shape = 's32[1]{0}', space=sflag, size = 0x4, scoped, tag = 'scoped memory for network_forward.1']
    #allocation7 [shape = 's32[1]{0}', space=sflag, size = 0x4, scoped, tag = 'scoped memory for network_forward.1']
    #allocation8 [shape = 'u8[1024]{0}', space=vmem, size = 0x400, scoped, tag = 'output window, operand 0, single buffered']
    %20 = vsyncpa [#allocation6], 0
    %21 = vsyncpa [#allocation7], 0
    // Predicated region
    $region2: #{network_forward.1} parent=1 // pred_check
      _
    $region3: #{network_forward.1} parent=1 // pred_check_branch
      %23 = sbr.rel (0) target = $region5
    $region4: #{network_forward.1} parent=1 // pred_region
      _
    $region5: #{network_forward.1} parent=1 // pred_fallthru
      _
    // Predicated region
    $region6: #{network_forward.1} parent=1 // pred_check
      _
    $region7: #{network_forward.1} parent=1 // pred_check_branch
      %25 = sbr.rel (0) target = $region9
    $region8: #{network_forward.1} parent=1 // pred_region
      _
    $region9: #{network_forward.1} parent=1 // pred_fallthru
      _
    // Predicated region
    $region10: #{network_forward.1} parent=1 // pred_check
      _
    $region11: #{network_forward.1} parent=1 // pred_check_branch
      %27 = sbr.rel (0) target = $region13
    $region12: #{network_forward.1} parent=1 // pred_region
      _
    $region13: #{network_forward.1} parent=1 // pred_fallthru
      _
    // Predicated region
    $region14: #{network_forward.1} parent=1 // pred_check
      _
    $region15: #{network_forward.1} parent=1 // pred_check_branch
      %29 = sbr.rel (0) target = $region17
    $region16: #{network_forward.1} parent=1 // pred_region
      _
    $region17: #{network_forward.1} parent=1 // pred_fallthru
      _
    // Predicated region
    $region18: #{network_forward.1} parent=1 // pred_check
      _
    $region19: #{network_forward.1} parent=1 // pred_check_branch
      %31 = sbr.rel (0) target = $region21
    $region20: #{network_forward.1} parent=1 // pred_region
      _
    $region21: #{network_forward.1} parent=1 // pred_fallthru
      _
    // Predicated region
    $region22: #{network_forward.1} parent=1 // pred_check
      _
    $region23: #{network_forward.1} parent=1 // pred_check_branch
      %33 = sbr.rel (0) target = $region25
    $region24: #{network_forward.1} parent=1 // pred_region
      _
    $region25: #{network_forward.1} parent=1 // pred_fallthru
      _
    // Predicated region
    $region26: #{network_forward.1} parent=1 // pred_check
      _
    $region27: #{network_forward.1} parent=1 // pred_check_branch
      %35 = sbr.rel (0) target = $region29
    $region28: #{network_forward.1} parent=1 // pred_region
      _
    $region29: #{network_forward.1} parent=1 // pred_fallthru
      _
    // Predicated region
    $region30: #{network_forward.1} parent=1 // pred_check
      _
    $region31: #{network_forward.1} parent=1 // pred_check_branch
      %37 = sbr.rel (0) target = $region33
    $region32: #{network_forward.1} parent=1 // pred_region
      _
    $region33: #{network_forward.1} parent=1 // pred_fallthru
      _
    // Predicated region
    $region34: #{network_forward.1} parent=1 // pred_check
      _
    $region35: #{network_forward.1} parent=1 // pred_check_branch
      %39 = sbr.rel (0) target = $region37
    $region36: #{network_forward.1} parent=1 // pred_region
      _
    $region37: #{network_forward.1} parent=1 // pred_fallthru
      _
    // Predicated region
    $region38: #{network_forward.1} parent=1 // pred_check
      _
    $region39: #{network_forward.1} parent=1 // pred_check_branch
      %41 = sbr.rel (0) target = $region41
    $region40: #{network_forward.1} parent=1 // pred_region
      _
    $region41: #{network_forward.1} parent=1 // pred_fallthru
      _
    // Predicated region
    $region42: #{network_forward.1} parent=1 // pred_check
      _
    $region43: #{network_forward.1} parent=1 // pred_check_branch
      %43 = sbr.rel (0) target = $region45
    $region44: #{network_forward.1} parent=1 // pred_region
      _
    $region45: #{network_forward.1} parent=1 // pred_fallthru
      _
    // Predicated region
    $region46: #{network_forward.1} parent=1 // pred_check
      _
    $region47: #{network_forward.1} parent=1 // pred_check_branch
      %45 = sbr.rel (0) target = $region49
    $region48: #{network_forward.1} parent=1 // pred_region
      _
    $region49: #{network_forward.1} parent=1 // pred_fallthru
      _
    // Predicated region
    $region50: #{network_forward.1} parent=1 // pred_check
      _
    $region51: #{network_forward.1} parent=1 // pred_check_branch
      %47 = sbr.rel (0) target = $region53
    $region52: #{network_forward.1} parent=1 // pred_region
      _
    $region53: #{network_forward.1} parent=1 // pred_fallthru
      _
    // Predicated region
    $region54: #{network_forward.1} parent=1 // pred_check
      _
    $region55: #{network_forward.1} parent=1 // pred_check_branch
      %49 = sbr.rel (0) target = $region57
    $region56: #{network_forward.1} parent=1 // pred_region
      %s51 = ssub.s32 2048, 2048
      %52 = vsyncadd [#allocation6], %s51
      %s53 = sshll.u32 [#allocation5], 4
      %s54 = int_to_ptr.vmem [resolvable:$true] %s53
      %59 = dma.hbm_to_vmem [thread:$0]  %s13, 2048, %s54, [#allocation6], 128, 128, 8
    $region57: #{network_forward.1} parent=1 // pred_fallthru
      _
    // Predicated region
    $region58: #{network_forward.1} parent=1 // pred_check
      _
    $region59: #{network_forward.1} parent=1 // pred_check_branch
      %61 = sbr.rel (0) target = $region61
    $region60: #{network_forward.1} parent=1 // pred_region
      _
    $region61: #{network_forward.1} parent=1 // pred_fallthru
      _
    // Predicated region
    $region62: #{network_forward.1} parent=1 // pred_check
      _
    $region63: #{network_forward.1} parent=1 // pred_check_branch
      %63 = sbr.rel (0) target = $region65
    $region64: #{network_forward.1} parent=1 // pred_region
      %64 = dma.done [#allocation6], 2048
    $region65: #{network_forward.1} parent=1 // pred_fallthru
      _
    %v65 = vld [vmem:[%s0] sm:$0xff]
    %v66 = vld [vmem:[%s0 + $0x8] sm:$0xff]
    %v67 = vld [vmem:[%s0 + $0x10] sm:$0xff]
    %v68 = vld [vmem:[%s0 + $0x20] sm:$0xff]
    %v69 = vld [vmem:[%s0 + $0x28] sm:$0xff]
    %v70 = vld [vmem:[%s0 + $0x30] sm:$0xff]
    %v71 = vld [vmem:[%s0 + $0x1] sm:$0xff]
    %v72 = vld [vmem:[%s0 + $0x9] sm:$0xff]
    %v73 = vld [vmem:[%s0 + $0x11] sm:$0xff]
    %v74 = vld [vmem:[%s0 + $0x21] sm:$0xff]
    %v75 = vld [vmem:[%s0 + $0x29] sm:$0xff]
    %v76 = vld [vmem:[%s0 + $0x31] sm:$0xff]
    %v77 = vld [vmem:[%s0 + $0x2] sm:$0xff]
    %v78 = vld [vmem:[%s0 + $0xa] sm:$0xff]
    %v79 = vld [vmem:[%s0 + $0x12] sm:$0xff]
    %v80 = vld [vmem:[%s0 + $0x22] sm:$0xff]
    %v81 = vld [vmem:[%s0 + $0x2a] sm:$0xff]
    %v82 = vld [vmem:[%s0 + $0x32] sm:$0xff]
    %v83 = vld [vmem:[%s0 + $0x3] sm:$0xff]
    %v84 = vld [vmem:[%s0 + $0xb] sm:$0xff]
    %v85 = vld [vmem:[%s0 + $0x13] sm:$0xff]
    %v86 = vld [vmem:[%s0 + $0x23] sm:$0xff]
    %v87 = vld [vmem:[%s0 + $0x2b] sm:$0xff]
    %v88 = vld [vmem:[%s0 + $0x33] sm:$0xff]
    %v89 = vld [vmem:[%s0 + $0x4] sm:$0xff]
    %v90 = vld [vmem:[%s0 + $0xc] sm:$0xff]
    %v91 = vld [vmem:[%s0 + $0x14] sm:$0xff]
    %v92 = vld [vmem:[%s0 + $0x24] sm:$0xff]
    %v93 = vld [vmem:[%s0 + $0x2c] sm:$0xff]
    %v94 = vld [vmem:[%s0 + $0x34] sm:$0xff]
    %101 = vrot.lane.b32.xlu0 %v71, 28
    %v102 = vpop.permute.xlu0 %101
    %103 = vrot.lane.b32.xlu0 %v72, 28
    %v104 = vpop.permute.xlu0 %103
    %105 = vrot.lane.b32.xlu0 %v73, 28
    %v106 = vpop.permute.xlu0 %105
    %107 = vrot.lane.b32.xlu0 %v74, 28
    %v108 = vpop.permute.xlu0 %107
    %109 = vrot.lane.b32.xlu0 %v75, 28
    %v110 = vpop.permute.xlu0 %109
    %111 = vrot.lane.b32.xlu0 %v76, 28
    %v112 = vpop.permute.xlu0 %111
    %125 = vrot.lane.b32.xlu0 %v77, 56
    %v126 = vpop.permute.xlu0 %125
    %127 = vrot.lane.b32.xlu0 %v78, 56
    %v128 = vpop.permute.xlu0 %127
    %129 = vrot.lane.b32.xlu0 %v79, 56
    %v130 = vpop.permute.xlu0 %129
    %131 = vrot.lane.b32.xlu0 %v80, 56
    %v132 = vpop.permute.xlu0 %131
    %133 = vrot.lane.b32.xlu0 %v81, 56
    %v134 = vpop.permute.xlu0 %133
    %135 = vrot.lane.b32.xlu0 %v82, 56
    %v136 = vpop.permute.xlu0 %135
    %149 = vrot.lane.b32.xlu0 %v83, 84
    %v150 = vpop.permute.xlu0 %149
    %151 = vrot.lane.b32.xlu0 %v84, 84
    %v152 = vpop.permute.xlu0 %151
    %153 = vrot.lane.b32.xlu0 %v85, 84
    %v154 = vpop.permute.xlu0 %153
    %155 = vrot.lane.b32.xlu0 %v86, 84
    %v156 = vpop.permute.xlu0 %155
    %157 = vrot.lane.b32.xlu0 %v87, 84
    %v158 = vpop.permute.xlu0 %157
    %159 = vrot.lane.b32.xlu0 %v88, 84
    %v160 = vpop.permute.xlu0 %159
    %173 = vrot.lane.b32.xlu0 %v89, 112
    %v174 = vpop.permute.xlu0 %173
    %175 = vrot.lane.b32.xlu0 %v90, 112
    %v176 = vpop.permute.xlu0 %175
    %177 = vrot.lane.b32.xlu0 %v91, 112
    %v178 = vpop.permute.xlu0 %177
    %179 = vrot.lane.b32.xlu0 %v92, 112
    %v180 = vpop.permute.xlu0 %179
    %181 = vrot.lane.b32.xlu0 %v93, 112
    %v182 = vpop.permute.xlu0 %181
    %183 = vrot.lane.b32.xlu0 %v94, 112
    %v184 = vpop.permute.xlu0 %183
    %vm191 = vcmask 228352
    %v192 = vsel %vm191, %v65, %v102
    %v193 = vsel %vm191, %v66, %v104
    %v194 = vsel %vm191, %v67, %v106
    %v195 = vsel %vm191, %v68, %v108
    %v196 = vsel %vm191, %v69, %v110
    %v197 = vsel %vm191, %v70, %v112
    %vm198 = vcmask 457728
    %v199 = vsel %vm198, %v192, %v126
    %v200 = vsel %vm198, %v193, %v128
    %v201 = vsel %vm198, %v194, %v130
    %v202 = vsel %vm198, %v195, %v132
    %v203 = vsel %vm198, %v196, %v134
    %v204 = vsel %vm198, %v197, %v136
    %vm205 = vcmask 687104
    %v206 = vsel %vm205, %v199, %v150
    %v207 = vsel %vm205, %v200, %v152
    %v208 = vsel %vm205, %v201, %v154
    %v209 = vsel %vm205, %v202, %v156
    %v210 = vsel %vm205, %v203, %v158
    %v211 = vsel %vm205, %v204, %v160
    %vm212 = vcmask 916480
    %v213 = vsel %vm212, %v206, %v174
    %v214 = vsel %vm212, %v207, %v176
    %v215 = vsel %vm212, %v208, %v178
    %v216 = vsel %vm212, %v209, %v180
    %v217 = vsel %vm212, %v210, %v182
    %v218 = vsel %vm212, %v211, %v184
    %v219 = vld [vmem:[%s1] sm:$0xff]
    %v220 = vld [vmem:[%s1 + $0x8] sm:$0xff]
    %v221 = vld [vmem:[%s1 + $0x10] sm:$0xff]
    %v222 = vld [vmem:[%s1 + $0x18] sm:$0xff]
    %v223 = vld [vmem:[%s1 + $0x20] sm:$0xff]
    %v224 = vld [vmem:[%s1 + $0x28] sm:$0xff]
    %v225 = vld [vmem:[%s1 + $0x30] sm:$0xff]
    %v226 = vld [vmem:[%s1 + $0x38] sm:$0xff]
    %v227 = vld [vmem:[%s1 + $0x40] sm:$0xff]
    %v228 = vld [vmem:[%s1 + $0x48] sm:$0xff]
    %v229 = vld [vmem:[%s1 + $0x50] sm:$0xff]
    %v230 = vld [vmem:[%s1 + $0x58] sm:$0xff]
    %v231 = vld [vmem:[%s1 + $0x60] sm:$0xff]
    %v232 = vld [vmem:[%s1 + $0x68] sm:$0xff]
    %v233 = vld [vmem:[%s1 + $0x70] sm:$0xff]
    %v234 = vld [vmem:[%s1 + $0x78] sm:$0xff]
    %v235 = vld [vmem:[%s1 + $0x80] sm:$0xff]
    %v236 = vld [vmem:[%s1 + $0x88] sm:$0xff]
    %v237 = vld [vmem:[%s1 + $0x90] sm:$0xff]
    %v238 = vld [vmem:[%s1 + $0x98] sm:$0xff]
    %v239 = vld [vmem:[%s1 + $0xa0] sm:$0xff]
    %v240 = vld [vmem:[%s1 + $0xa8] sm:$0xff]
    %v241 = vld [vmem:[%s1 + $0xb0] sm:$0xff]
    %v242 = vld [vmem:[%s1 + $0xb8] sm:$0xff]
    %v243 = vld [vmem:[%s1 + $0xc0] sm:$0xff]
    %v244 = vld [vmem:[%s1 + $0xc8] sm:$0xff]
    %v245 = vld [vmem:[%s1 + $0xd0] sm:$0xff]
    %v246 = vld [vmem:[%s1 + $0xd8] sm:$0xff]
    %v247 = vld [vmem:[%s1 + $0xe0] sm:$0xff]
    %v248 = vld [vmem:[%s1 + $0xe8] sm:$0xff]
    %v249 = vld [vmem:[%s1 + $0xf0] sm:$0xff]
    %v250 = vld [vmem:[%s1 + $0xf8] sm:$0xff]
    %v251 = vld [vmem:[%s1 + $0x100] sm:$0xff]
    %v252 = vld [vmem:[%s1 + $0x108] sm:$0xff]
    %v253 = vld [vmem:[%s1 + $0x110] sm:$0xf]
    %v254 = vld [vmem:[%s1 + $0x118] sm:$0xf]
    %v255 = vld [vmem:[%s2] sm:$0x3]
    %v257 = vlaneseq
    %v258 = vshrl.u32 %v257, 7
    %v259 = vsub.s32 0, %v258
    %v260 = vrot.slane %v255, %v259
    %v261 = vlaneseq
    %v262 = vshrl.u32 %v261, 7
    %v263 = vsub.s32 1, %v262
    %v264 = vrot.slane %v255, %v263
    %vm267 = vcmask 97280
    %v268 = vsel %vm267, %v174, 0
    %v270 = vsel %vm267, %v176, 0
    %v272 = vsel %vm267, %v178, 0
    %v274 = vsel %vm267, %v180, 0
    %v276 = vsel %vm267, %v182, 0
    %v278 = vsel %vm267, %v184, 0
    %vm280 = vcmask 1043456
    %v282 = vsel %vm280, %v253, 0
    %v285 = vsel %vm280, %v254, 0
    %287 = vmatprep.subr.mxu0 %v220
    %288 = vmatpush1.msra.mxu0 %v219
    %289 = vmatprep.subr.mxu0 %v222
    %290 = vmatpush1.msra.mxu0 %v221
    %291 = vmatprep.subr.mxu0 %v224
    %292 = vmatpush1.msra.mxu0 %v223
    %293 = vmatprep.subr.mxu0 %v226
    %294 = vmatpush1.msra.mxu0 %v225
    %295 = vmatprep.subr.mxu0 %v228
    %296 = vmatpush1.msra.mxu0 %v227
    %297 = vmatprep.subr.mxu0 %v230
    %298 = vmatpush1.msra.mxu0 %v229
    %299 = vmatprep.subr.mxu0 %v232
    %300 = vmatpush1.msra.mxu0 %v231
    %301 = vmatprep.subr.mxu0 %v234
    %302 = vmatpush1.msra.mxu0 %v233
    %303 = vmatprep.subr.mxu0 %v236
    %304 = vmatpush1.msra.mxu0 %v235
    %305 = vmatprep.subr.mxu0 %v238
    %306 = vmatpush1.msra.mxu0 %v237
    %307 = vmatprep.subr.mxu0 %v240
    %308 = vmatpush1.msra.mxu0 %v239
    %309 = vmatprep.subr.mxu0 %v242
    %310 = vmatpush1.msra.mxu0 %v241
    %311 = vmatprep.subr.mxu0 %v244
    %312 = vmatpush1.msra.mxu0 %v243
    %313 = vmatprep.subr.mxu0 %v246
    %314 = vmatpush1.msra.mxu0 %v245
    %315 = vmatprep.subr.mxu0 %v248
    %316 = vmatpush1.msra.mxu0 %v247
    %317 = vmatprep.subr.mxu0 %v250
    %318 = vmatpush1.msra.mxu0 %v249
    %319 = vmatprep.subr.mxu0 %v252
    %320 = vmatpush1.msra.mxu0 %v251
    %321 = vmatprep.subr.mxu0 %v285
    %322 = vmatpush1.msra.mxu0 %v282
    %323 = vmatprep.subr.mxu0 0.0
    %324 = vmatpush1.msra.mxu0 0.0
    %325 = vmatprep.subr.mxu0 0.0
    %326 = vmatpush1.msra.mxu0 0.0
    %327 = vmatprep.subr.mxu0 0.0
    %328 = vmatpush1.msra.mxu0 0.0
    %329 = vmatprep.subr.mxu0 0.0
    %330 = vmatpush1.msra.mxu0 0.0
    %331 = vmatprep.subr.mxu0 0.0
    %332 = vmatpush1.msra.mxu0 0.0
    %333 = vmatprep.subr.mxu0 0.0
    %334 = vmatpush1.msra.mxu0 0.0
    %335 = vmatprep.subr.mxu0 0.0
    %336 = vmatpush1.msra.mxu0 0.0
    %337 = vmatprep.subr.mxu0 0.0
    %338 = vmatpush1.msra.mxu0 0.0
    %339 = vmatprep.subr.mxu0 0.0
    %340 = vmatpush1.msra.mxu0 0.0
    %341 = vmatprep.subr.mxu0 0.0
    %342 = vmatpush1.msra.mxu0 0.0
    %343 = vmatprep.subr.mxu0 0.0
    %344 = vmatpush1.msra.mxu0 0.0
    %345 = vmatprep.subr.mxu0 0.0
    %346 = vmatpush1.msra.mxu0 0.0
    %347 = vmatprep.subr.mxu0 0.0
    %348 = vmatpush1.msra.mxu0 0.0
    %349 = vmatprep.subr.mxu0 0.0
    %350 = vmatpush1.msra.mxu0 0.0
    %351 = vmatprep.mubr.f32.mxu0 %v268
    %352 = vmatmul.mubr.f32.gmra.mrb[0].mxu0 %v213
    %v353 = vpop.f32.mrb[0].mxu0
    %v354 = vadd.f32 %v260, %v353
    %v355 = vpop.f32.mrb[0].mxu0
    %v356 = vadd.f32 %v264, %v355
    %357 = vmatprep.mubr.f32.mxu0 %v270
    %358 = vmatmul.mubr.f32.gmra.mrb[0].mxu0 %v214
    %v359 = vpop.f32.mrb[0].mxu0
    %v360 = vadd.f32 %v260, %v359
    %v361 = vpop.f32.mrb[0].mxu0
    %v362 = vadd.f32 %v264, %v361
    %363 = vmatprep.mubr.f32.mxu0 %v272
    %364 = vmatmul.mubr.f32.gmra.mrb[0].mxu0 %v215
    %v365 = vpop.f32.mrb[0].mxu0
    %v366 = vadd.f32 %v260, %v365
    %v367 = vpop.f32.mrb[0].mxu0
    %v368 = vadd.f32 %v264, %v367
    %369 = vmatprep.mubr.f32.mxu0 %v274
    %370 = vmatmul.mubr.f32.gmra.mrb[0].mxu0 %v216
    %v371 = vpop.f32.mrb[0].mxu0
    %v372 = vadd.f32 %v260, %v371
    %v373 = vpop.f32.mrb[0].mxu0
    %v374 = vadd.f32 %v264, %v373
    %375 = vmatprep.mubr.f32.mxu0 %v276
    %376 = vmatmul.mubr.f32.gmra.mrb[0].mxu0 %v217
    %v377 = vpop.f32.mrb[0].mxu0
    %v378 = vadd.f32 %v260, %v377
    %v379 = vpop.f32.mrb[0].mxu0
    %v380 = vadd.f32 %v264, %v379
    %381 = vmatprep.mubr.f32.mxu0 %v278
    %382 = vmatmul.mubr.f32.gmra.mrb[0].mxu0 %v218
    %v383 = vpop.f32.mrb[0].mxu0
    %v384 = vadd.f32 %v260, %v383
    %v385 = vpop.f32.mrb[0].mxu0
    %v386 = vadd.f32 %v264, %v385
    %387 = vdwg.mxu0
    %v388 = vmax.f32 %v354, 0.0
    %v389 = vmax.f32 %v356, 0.0
    %v390 = vmax.f32 %v360, 0.0
    %v391 = vmax.f32 %v362, 0.0
    %v392 = vmax.f32 %v366, 0.0
    %v393 = vmax.f32 %v368, 0.0
    %v394 = vmax.f32 %v372, 0.0
    %v395 = vmax.f32 %v374, 0.0
    %v396 = vmax.f32 %v378, 0.0
    %v397 = vmax.f32 %v380, 0.0
    %v398 = vmax.f32 %v384, 0.0
    %v399 = vmax.f32 %v386, 0.0
    %v400 = vld [vmem:[%s3] sm:$0xff]
    %v401 = vld [vmem:[%s3 + $0x8] sm:$0xff]
    %v402 = vld [vmem:[%s3 + $0x10] sm:$0xff]
    %v403 = vld [vmem:[%s3 + $0x18] sm:$0xff]
    %v404 = vld [vmem:[%s3 + $0x20] sm:$0xff]
    %v405 = vld [vmem:[%s3 + $0x28] sm:$0xff]
    %v406 = vld [vmem:[%s3 + $0x30] sm:$0xff]
    %v407 = vld [vmem:[%s3 + $0x38] sm:$0xff]
    %v408 = vld [vmem:[%s3 + $0x40] sm:$0xff]
    %v409 = vld [vmem:[%s3 + $0x48] sm:$0xff]
    %v410 = vld [vmem:[%s3 + $0x50] sm:$0xff]
    %v411 = vld [vmem:[%s3 + $0x58] sm:$0xff]
    %v412 = vld [vmem:[%s3 + $0x60] sm:$0xff]
    %v413 = vld [vmem:[%s3 + $0x68] sm:$0xff]
    %v414 = vld [vmem:[%s3 + $0x70] sm:$0xff]
    %v415 = vld [vmem:[%s3 + $0x78] sm:$0xff]
    %v416 = vld [vmem:[%s3 + $0x80] sm:$0xff]
    %v417 = vld [vmem:[%s3 + $0x88] sm:$0xff]
    %vm418 = vcmask 130048
    %v420 = vsel %vm418, %v389, 0
    %v423 = vsel %vm418, %v391, 0
    %v426 = vsel %vm418, %v393, 0
    %v429 = vsel %vm418, %v395, 0
    %v432 = vsel %vm418, %v397, 0
    %v435 = vsel %vm418, %v399, 0
    %437 = vmatprep.subr.mxu0 0.0
    %438 = vmatpush1.msra.mxu0 %v400
    %439 = vmatprep.subr.mxu0 0.0
    %440 = vmatpush1.msra.mxu0 %v401
    %441 = vmatprep.subr.mxu0 0.0
    %442 = vmatpush1.msra.mxu0 %v402
    %443 = vmatprep.subr.mxu0 0.0
    %444 = vmatpush1.msra.mxu0 %v403
    %445 = vmatprep.subr.mxu0 0.0
    %446 = vmatpush1.msra.mxu0 %v404
    %447 = vmatprep.subr.mxu0 0.0
    %448 = vmatpush1.msra.mxu0 %v405
    %449 = vmatprep.subr.mxu0 0.0
    %450 = vmatpush1.msra.mxu0 %v406
    %451 = vmatprep.subr.mxu0 0.0
    %452 = vmatpush1.msra.mxu0 %v407
    %453 = vmatprep.subr.mxu0 0.0
    %454 = vmatpush1.msra.mxu0 %v408
    %455 = vmatprep.subr.mxu0 0.0
    %456 = vmatpush1.msra.mxu0 %v409
    %457 = vmatprep.subr.mxu0 0.0
    %458 = vmatpush1.msra.mxu0 %v410
    %459 = vmatprep.subr.mxu0 0.0
    %460 = vmatpush1.msra.mxu0 %v411
    %461 = vmatprep.subr.mxu0 0.0
    %462 = vmatpush1.msra.mxu0 %v412
    %463 = vmatprep.subr.mxu0 0.0
    %464 = vmatpush1.msra.mxu0 %v413
    %465 = vmatprep.subr.mxu0 0.0
    %466 = vmatpush1.msra.mxu0 %v414
    %467 = vmatprep.subr.mxu0 0.0
    %468 = vmatpush1.msra.mxu0 %v415
    %469 = vmatprep.subr.mxu0 0.0
    %470 = vmatpush1.msra.mxu0 %v416
    %471 = vmatprep.subr.mxu0 0.0
    %472 = vmatpush1.msra.mxu0 %v417
    %473 = vmatprep.subr.mxu0 0.0
    %474 = vmatpush1.msra.mxu0 0.0
    %475 = vmatprep.subr.mxu0 0.0
    %476 = vmatpush1.msra.mxu0 0.0
    %477 = vmatprep.subr.mxu0 0.0
    %478 = vmatpush1.msra.mxu0 0.0
    %479 = vmatprep.subr.mxu0 0.0
    %480 = vmatpush1.msra.mxu0 0.0
    %481 = vmatprep.subr.mxu0 0.0
    %482 = vmatpush1.msra.mxu0 0.0
    %483 = vmatprep.subr.mxu0 0.0
    %484 = vmatpush1.msra.mxu0 0.0
    %485 = vmatprep.subr.mxu0 0.0
    %486 = vmatpush1.msra.mxu0 0.0
    %487 = vmatprep.subr.mxu0 0.0
    %488 = vmatpush1.msra.mxu0 0.0
    %489 = vmatprep.subr.mxu0 0.0
    %490 = vmatpush1.msra.mxu0 0.0
    %491 = vmatprep.subr.mxu0 0.0
    %492 = vmatpush1.msra.mxu0 0.0
    %493 = vmatprep.subr.mxu0 0.0
    %494 = vmatpush1.msra.mxu0 0.0
    %495 = vmatprep.subr.mxu0 0.0
    %496 = vmatpush1.msra.mxu0 0.0
    %497 = vmatprep.subr.mxu0 0.0
    %498 = vmatpush1.msra.mxu0 0.0
    %499 = vmatprep.subr.mxu0 0.0
    %500 = vmatpush1.msra.mxu0 0.0
    %501 = vmatprep.mubr.f32.mxu0 %v420
    %502 = vmatmul.mubr.f32.gmra.mrb[0].mxu0 %v388
    %v503 = vpop.f32.mrb[0].mxu0
    %v504 = vadd.f32 0.0, %v503
    %v505 = vpop.f32.mrb[0].mxu0
    %506 = vmatprep.mubr.f32.mxu0 %v423
    %507 = vmatmul.mubr.f32.gmra.mrb[0].mxu0 %v390
    %v508 = vpop.f32.mrb[0].mxu0
    %v509 = vadd.f32 0.0, %v508
    %v510 = vpop.f32.mrb[0].mxu0
    %511 = vmatprep.mubr.f32.mxu0 %v426
    %512 = vmatmul.mubr.f32.gmra.mrb[0].mxu0 %v392
    %v513 = vpop.f32.mrb[0].mxu0
    %v514 = vadd.f32 0.0, %v513
    %v515 = vpop.f32.mrb[0].mxu0
    %516 = vmatprep.mubr.f32.mxu0 %v429
    %517 = vmatmul.mubr.f32.gmra.mrb[0].mxu0 %v394
    %v518 = vpop.f32.mrb[0].mxu0
    %v519 = vadd.f32 0.0, %v518
    %v520 = vpop.f32.mrb[0].mxu0
    %521 = vmatprep.mubr.f32.mxu0 %v432
    %522 = vmatmul.mubr.f32.gmra.mrb[0].mxu0 %v396
    %v523 = vpop.f32.mrb[0].mxu0
    %v524 = vadd.f32 0.0, %v523
    %v525 = vpop.f32.mrb[0].mxu0
    %526 = vmatprep.mubr.f32.mxu0 %v435
    %527 = vmatmul.mubr.f32.gmra.mrb[0].mxu0 %v398
    %v528 = vpop.f32.mrb[0].mxu0
    %v529 = vadd.f32 0.0, %v528
    %v530 = vpop.f32.mrb[0].mxu0
    %531 = vdwg.mxu0
    %v532 = vld [vmem:[%s4] sm:$0xff]
    %v533 = vld [vmem:[%s4 + $0x8] sm:$0xff]
    %v534 = vld [vmem:[%s4 + $0x10] sm:$0xff]
    %v535 = vld [vmem:[%s4 + $0x18] sm:$0xff]
    %v536 = vld [vmem:[%s4 + $0x20] sm:$0xff]
    %v537 = vld [vmem:[%s4 + $0x28] sm:$0xff]
    %v538 = vld [vmem:[%s4 + $0x30] sm:$0xff]
    %v539 = vld [vmem:[%s4 + $0x38] sm:$0xff]
    %v540 = vld [vmem:[%s4 + $0x40] sm:$0xff]
    %v541 = vld [vmem:[%s4 + $0x48] sm:$0xff]
    %v542 = vld [vmem:[%s4 + $0x50] sm:$0xff]
    %v543 = vld [vmem:[%s4 + $0x58] sm:$0xff]
    %v544 = vld [vmem:[%s4 + $0x60] sm:$0xff]
    %v545 = vld [vmem:[%s4 + $0x68] sm:$0xff]
    %v546 = vld [vmem:[%s4 + $0x70] sm:$0xff]
    %v547 = vld [vmem:[%s4 + $0x78] sm:$0xff]
    %v548 = vld [vmem:[%s4 + $0x80] sm:$0xff]
    %v549 = vld [vmem:[%s4 + $0x88] sm:$0xff]
    %550 = vmatprep.subr.mxu0 0.0
    %551 = vmatpush1.msra.mxu0 %v532
    %552 = vmatprep.subr.mxu0 0.0
    %553 = vmatpush1.msra.mxu0 %v533
    %554 = vmatprep.subr.mxu0 0.0
    %555 = vmatpush1.msra.mxu0 %v534
    %556 = vmatprep.subr.mxu0 0.0
    %557 = vmatpush1.msra.mxu0 %v535
    %558 = vmatprep.subr.mxu0 0.0
    %559 = vmatpush1.msra.mxu0 %v536
    %560 = vmatprep.subr.mxu0 0.0
    %561 = vmatpush1.msra.mxu0 %v537
    %562 = vmatprep.subr.mxu0 0.0
    %563 = vmatpush1.msra.mxu0 %v538
    %564 = vmatprep.subr.mxu0 0.0
    %565 = vmatpush1.msra.mxu0 %v539
    %566 = vmatprep.subr.mxu0 0.0
    %567 = vmatpush1.msra.mxu0 %v540
    %568 = vmatprep.subr.mxu0 0.0
    %569 = vmatpush1.msra.mxu0 %v541
    %570 = vmatprep.subr.mxu0 0.0
    %571 = vmatpush1.msra.mxu0 %v542
    %572 = vmatprep.subr.mxu0 0.0
    %573 = vmatpush1.msra.mxu0 %v543
    %574 = vmatprep.subr.mxu0 0.0
    %575 = vmatpush1.msra.mxu0 %v544
    %576 = vmatprep.subr.mxu0 0.0
    %577 = vmatpush1.msra.mxu0 %v545
    %578 = vmatprep.subr.mxu0 0.0
    %579 = vmatpush1.msra.mxu0 %v546
    %580 = vmatprep.subr.mxu0 0.0
    %581 = vmatpush1.msra.mxu0 %v547
    %582 = vmatprep.subr.mxu0 0.0
    %583 = vmatpush1.msra.mxu0 %v548
    %584 = vmatprep.subr.mxu0 0.0
    %585 = vmatpush1.msra.mxu0 %v549
    %586 = vmatprep.subr.mxu0 0.0
    %587 = vmatpush1.msra.mxu0 0.0
    %588 = vmatprep.subr.mxu0 0.0
    %589 = vmatpush1.msra.mxu0 0.0
    %590 = vmatprep.subr.mxu0 0.0
    %591 = vmatpush1.msra.mxu0 0.0
    %592 = vmatprep.subr.mxu0 0.0
    %593 = vmatpush1.msra.mxu0 0.0
    %594 = vmatprep.subr.mxu0 0.0
    %595 = vmatpush1.msra.mxu0 0.0
    %596 = vmatprep.subr.mxu0 0.0
    %597 = vmatpush1.msra.mxu0 0.0
    %598 = vmatprep.subr.mxu0 0.0
    %599 = vmatpush1.msra.mxu0 0.0
    %600 = vmatprep.subr.mxu0 0.0
    %601 = vmatpush1.msra.mxu0 0.0
    %602 = vmatprep.subr.mxu0 0.0
    %603 = vmatpush1.msra.mxu0 0.0
    %604 = vmatprep.subr.mxu0 0.0
    %605 = vmatpush1.msra.mxu0 0.0
    %606 = vmatprep.subr.mxu0 0.0
    %607 = vmatpush1.msra.mxu0 0.0
    %608 = vmatprep.subr.mxu0 0.0
    %609 = vmatpush1.msra.mxu0 0.0
    %610 = vmatprep.subr.mxu0 0.0
    %611 = vmatpush1.msra.mxu0 0.0
    %612 = vmatprep.subr.mxu0 0.0
    %613 = vmatpush1.msra.mxu0 0.0
    %614 = vmatprep.mubr.f32.mxu0 %v420
    %615 = vmatmul.mubr.f32.gmra.mrb[0].mxu0 %v388
    %v616 = vpop.f32.mrb[0].mxu0
    %v617 = vadd.f32 0.0, %v616
    %v618 = vpop.f32.mrb[0].mxu0
    %619 = vmatprep.mubr.f32.mxu0 %v423
    %620 = vmatmul.mubr.f32.gmra.mrb[0].mxu0 %v390
    %v621 = vpop.f32.mrb[0].mxu0
    %v622 = vadd.f32 0.0, %v621
    %v623 = vpop.f32.mrb[0].mxu0
    %624 = vmatprep.mubr.f32.mxu0 %v426
    %625 = vmatmul.mubr.f32.gmra.mrb[0].mxu0 %v392
    %v626 = vpop.f32.mrb[0].mxu0
    %v627 = vadd.f32 0.0, %v626
    %v628 = vpop.f32.mrb[0].mxu0
    %629 = vmatprep.mubr.f32.mxu0 %v429
    %630 = vmatmul.mubr.f32.gmra.mrb[0].mxu0 %v394
    %v631 = vpop.f32.mrb[0].mxu0
    %v632 = vadd.f32 0.0, %v631
    %v633 = vpop.f32.mrb[0].mxu0
    %634 = vmatprep.mubr.f32.mxu0 %v432
    %635 = vmatmul.mubr.f32.gmra.mrb[0].mxu0 %v396
    %v636 = vpop.f32.mrb[0].mxu0
    %v637 = vadd.f32 0.0, %v636
    %v638 = vpop.f32.mrb[0].mxu0
    %639 = vmatprep.mubr.f32.mxu0 %v435
    %640 = vmatmul.mubr.f32.gmra.mrb[0].mxu0 %v398
    %v641 = vpop.f32.mrb[0].mxu0
    %v642 = vadd.f32 0.0, %v641
    %v643 = vpop.f32.mrb[0].mxu0
    %644 = vdwg.mxu0
    %v645 = vmax.f32 %v504, %v617
    %v646 = vmax.f32 %v509, %v622
    %v647 = vmax.f32 %v514, %v627
    %v648 = vmax.f32 %v519, %v632
    %v649 = vmax.f32 %v524, %v637
    %v650 = vmax.f32 %v529, %v642
    %vm651 = vcmask 588800
    %652 = vst.msk [vmem:[#allocation2] sm:$0xff] %vm651, %v645
    %653 = vst.msk [vmem:[#allocation2 + $0x8] sm:$0xff] %vm651, %v646
    %654 = vst.msk [vmem:[#allocation2 + $0x10] sm:$0xff] %vm651, %v647
    %655 = vst.msk [vmem:[#allocation2 + $0x18] sm:$0xff] %vm651, %v648
    %656 = vst.msk [vmem:[#allocation2 + $0x20] sm:$0xff] %vm651, %v649
    %657 = vst.msk [vmem:[#allocation2 + $0x28] sm:$0xff] %vm651, %v650
    %v658 = vld [vmem:[#allocation2] sm:$0x1]
    %v659 = vld [vmem:[#allocation2 + $0x18] sm:$0x1]
    %v660 = vld [vmem:[#allocation2 + $0x1] sm:$0x1]
    %v661 = vld [vmem:[#allocation2 + $0x19] sm:$0x1]
    %v662 = vmax.f32 %v658, %v660
    %v663 = vmax.f32 %v659, %v661
    %vm664 = vcmask 581632
    %665 = vst.msk [vmem:[#allocation3] sm:$0x1] %vm664, %v662
    %666 = vst.msk [vmem:[#allocation3 + $0x10] sm:$0x1] %vm664, %v663
    %v667 = vld [vmem:[#allocation2 + $0x2] sm:$0x1]
    %v668 = vld [vmem:[#allocation2 + $0x1a] sm:$0x1]
    %v669 = vld [vmem:[#allocation2 + $0x3] sm:$0x1]
    %v670 = vld [vmem:[#allocation2 + $0x1b] sm:$0x1]
    %v671 = vmax.f32 %v667, %v669
    %v672 = vmax.f32 %v668, %v670
    %673 = vst.msk [vmem:[#allocation3 + $0x1] sm:$0x1] %vm664, %v671
    %674 = vst.msk [vmem:[#allocation3 + $0x11] sm:$0x1] %vm664, %v672
    %v675 = vld [vmem:[#allocation2 + $0x4] sm:$0x1]
    %v676 = vld [vmem:[#allocation2 + $0x1c] sm:$0x1]
    %v677 = vld [vmem:[#allocation2 + $0x5] sm:$0x1]
    %v678 = vld [vmem:[#allocation2 + $0x1d] sm:$0x1]
    %v679 = vmax.f32 %v675, %v677
    %v680 = vmax.f32 %v676, %v678
    %681 = vst.msk [vmem:[#allocation3 + $0x2] sm:$0x1] %vm664, %v679
    %682 = vst.msk [vmem:[#allocation3 + $0x12] sm:$0x1] %vm664, %v680
    %v683 = vld [vmem:[#allocation2 + $0x6] sm:$0x1]
    %v684 = vld [vmem:[#allocation2 + $0x1e] sm:$0x1]
    %v685 = vld [vmem:[#allocation2 + $0x7] sm:$0x1]
    %v686 = vld [vmem:[#allocation2 + $0x1f] sm:$0x1]
    %v687 = vmax.f32 %v683, %v685
    %v688 = vmax.f32 %v684, %v686
    %689 = vst.msk [vmem:[#allocation3 + $0x3] sm:$0x1] %vm664, %v687
    %690 = vst.msk [vmem:[#allocation3 + $0x13] sm:$0x1] %vm664, %v688
    %v691 = vld [vmem:[#allocation2 + $0x8] sm:$0x1]
    %v692 = vld [vmem:[#allocation2 + $0x20] sm:$0x1]
    %v693 = vld [vmem:[#allocation2 + $0x9] sm:$0x1]
    %v694 = vld [vmem:[#allocation2 + $0x21] sm:$0x1]
    %v695 = vmax.f32 %v691, %v693
    %v696 = vmax.f32 %v692, %v694
    %697 = vst.msk [vmem:[#allocation3 + $0x4] sm:$0x1] %vm664, %v695
    %698 = vst.msk [vmem:[#allocation3 + $0x14] sm:$0x1] %vm664, %v696
    %v699 = vld [vmem:[#allocation2 + $0xa] sm:$0x1]
    %v700 = vld [vmem:[#allocation2 + $0x22] sm:$0x1]
    %v701 = vld [vmem:[#allocation2 + $0xb] sm:$0x1]
    %v702 = vld [vmem:[#allocation2 + $0x23] sm:$0x1]
    %v703 = vmax.f32 %v699, %v701
    %v704 = vmax.f32 %v700, %v702
    %705 = vst.msk [vmem:[#allocation3 + $0x5] sm:$0x1] %vm664, %v703
    %706 = vst.msk [vmem:[#allocation3 + $0x15] sm:$0x1] %vm664, %v704
    %v707 = vld [vmem:[#allocation2 + $0xc] sm:$0x1]
    %v708 = vld [vmem:[#allocation2 + $0x24] sm:$0x1]
    %v709 = vld [vmem:[#allocation2 + $0xd] sm:$0x1]
    %v710 = vld [vmem:[#allocation2 + $0x25] sm:$0x1]
    %v711 = vmax.f32 %v707, %v709
    %v712 = vmax.f32 %v708, %v710
    %713 = vst.msk [vmem:[#allocation3 + $0x6] sm:$0x1] %vm664, %v711
    %714 = vst.msk [vmem:[#allocation3 + $0x16] sm:$0x1] %vm664, %v712
    %v715 = vld [vmem:[#allocation2 + $0xe] sm:$0x1]
    %v716 = vld [vmem:[#allocation2 + $0x26] sm:$0x1]
    %v717 = vld [vmem:[#allocation2 + $0xf] sm:$0x1]
    %v718 = vld [vmem:[#allocation2 + $0x27] sm:$0x1]
    %v719 = vmax.f32 %v715, %v717
    %v720 = vmax.f32 %v716, %v718
    %721 = vst.msk [vmem:[#allocation3 + $0x7] sm:$0x1] %vm664, %v719
    %722 = vst.msk [vmem:[#allocation3 + $0x17] sm:$0x1] %vm664, %v720
    %v723 = vld [vmem:[#allocation2 + $0x10] sm:$0x1]
    %v724 = vld [vmem:[#allocation2 + $0x28] sm:$0x1]
    %v725 = vld [vmem:[#allocation2 + $0x11] sm:$0x1]
    %v726 = vld [vmem:[#allocation2 + $0x29] sm:$0x1]
    %v727 = vmax.f32 %v723, %v725
    %v728 = vmax.f32 %v724, %v726
    %729 = vst.msk [vmem:[#allocation3 + $0x8] sm:$0x1] %vm664, %v727
    %730 = vst.msk [vmem:[#allocation3 + $0x18] sm:$0x1] %vm664, %v728
    %v731 = vld [vmem:[#allocation2 + $0x12] sm:$0x1]
    %v732 = vld [vmem:[#allocation2 + $0x2a] sm:$0x1]
    %v733 = vld [vmem:[#allocation2 + $0x13] sm:$0x1]
    %v734 = vld [vmem:[#allocation2 + $0x2b] sm:$0x1]
    %v735 = vmax.f32 %v731, %v733
    %v736 = vmax.f32 %v732, %v734
    %737 = vst.msk [vmem:[#allocation3 + $0x9] sm:$0x1] %vm664, %v735
    %738 = vst.msk [vmem:[#allocation3 + $0x19] sm:$0x1] %vm664, %v736
    %v739 = vld [vmem:[#allocation2 + $0x14] sm:$0x1]
    %v740 = vld [vmem:[#allocation2 + $0x2c] sm:$0x1]
    %v741 = vld [vmem:[#allocation2 + $0x15] sm:$0x1]
    %v742 = vld [vmem:[#allocation2 + $0x2d] sm:$0x1]
    %v743 = vmax.f32 %v739, %v741
    %v744 = vmax.f32 %v740, %v742
    %745 = vst.msk [vmem:[#allocation3 + $0xa] sm:$0x1] %vm664, %v743
    %746 = vst.msk [vmem:[#allocation3 + $0x1a] sm:$0x1] %vm664, %v744
    %v747 = vld [vmem:[#allocation2 + $0x16] sm:$0x1]
    %v748 = vld [vmem:[#allocation2 + $0x2e] sm:$0x1]
    %v749 = vld [vmem:[#allocation2 + $0x17] sm:$0x1]
    %v750 = vld [vmem:[#allocation2 + $0x2f] sm:$0x1]
    %v751 = vmax.f32 %v747, %v749
    %v752 = vmax.f32 %v748, %v750
    %753 = vst.msk [vmem:[#allocation3 + $0xb] sm:$0x1] %vm664, %v751
    %754 = vst.msk [vmem:[#allocation3 + $0x1b] sm:$0x1] %vm664, %v752
    %v755 = vld [vmem:[#allocation3] sm:$0xff]
    %v756 = vld [vmem:[#allocation3 + $0x10] sm:$0xff]
    %v757 = vld [vmem:[#allocation3 + $0x1] sm:$0xff]
    %v758 = vld [vmem:[#allocation3 + $0x11] sm:$0xff]
    %v759 = vld [vmem:[#allocation3 + $0x2] sm:$0xff]
    %v760 = vld [vmem:[#allocation3 + $0x12] sm:$0xff]
    %v761 = vld [vmem:[#allocation3 + $0x3] sm:$0xff]
    %v762 = vld [vmem:[#allocation3 + $0x13] sm:$0xff]
    %v763 = vld [vmem:[#allocation3 + $0x4] sm:$0xff]
    %v764 = vld [vmem:[#allocation3 + $0x14] sm:$0xff]
    %767 = vrot.lane.b32.xlu0 %v757, 72
    %v768 = vpop.permute.xlu0 %767
    %769 = vrot.lane.b32.xlu0 %v758, 72
    %v770 = vpop.permute.xlu0 %769
    %775 = vrot.lane.b32.xlu0 %v759, 16
    %v776 = vpop.permute.xlu0 %775
    %777 = vrot.lane.b32.xlu0 %v760, 16
    %v778 = vpop.permute.xlu0 %777
    %783 = vrot.lane.b32.xlu0 %v761, 88
    %v784 = vpop.permute.xlu0 %783
    %785 = vrot.lane.b32.xlu0 %v762, 88
    %v786 = vpop.permute.xlu0 %785
    %791 = vrot.lane.b32.xlu0 %v763, 32
    %v792 = vpop.permute.xlu0 %791
    %793 = vrot.lane.b32.xlu0 %v764, 32
    %v794 = vpop.permute.xlu0 %793
    %v797 = vsel %vm651, %v755, %v768
    %v798 = vsel %vm651, %v756, %v770
    %v799 = vsel %vm418, %v768, %v776
    %v800 = vsel %vm418, %v770, %v778
    %vm801 = vcmask 719872
    %v802 = vsel %vm801, %v799, %v784
    %v803 = vsel %vm801, %v800, %v786
    %vm804 = vcmask 261120
    %v805 = vsel %vm804, %v784, %v792
    %v806 = vsel %vm804, %v786, %v794
    %v807 = vld [vmem:[%s5] sm:$0xff]
    %v808 = vld [vmem:[%s5 + $0x8] sm:$0xff]
    %v809 = vld [vmem:[%s5 + $0x10] sm:$0xff]
    %v810 = vld [vmem:[%s5 + $0x18] sm:$0xff]
    %v811 = vld [vmem:[%s5 + $0x20] sm:$0xff]
    %v812 = vld [vmem:[%s5 + $0x28] sm:$0xff]
    %v813 = vld [vmem:[%s5 + $0x30] sm:$0xff]
    %v814 = vld [vmem:[%s5 + $0x38] sm:$0xff]
    %v815 = vld [vmem:[%s5 + $0x40] sm:$0xff]
    %v816 = vld [vmem:[%s5 + $0x48] sm:$0xff]
    %v817 = vld [vmem:[%s5 + $0x50] sm:$0xff]
    %v818 = vld [vmem:[%s5 + $0x58] sm:$0xff]
    %v819 = vld [vmem:[%s5 + $0x60] sm:$0xff]
    %v820 = vld [vmem:[%s5 + $0x68] sm:$0xff]
    %v821 = vld [vmem:[%s5 + $0x70] sm:$0xff]
    %v822 = vld [vmem:[%s5 + $0x78] sm:$0xff]
    %v823 = vld [vmem:[%s5 + $0x80] sm:$0xff]
    %v824 = vld [vmem:[%s5 + $0x88] sm:$0xff]
    %v825 = vld [vmem:[%s5 + $0x90] sm:$0xff]
    %v826 = vld [vmem:[%s5 + $0x98] sm:$0xff]
    %v827 = vld [vmem:[%s5 + $0xa0] sm:$0xff]
    %v828 = vld [vmem:[%s5 + $0xa8] sm:$0xff]
    %v829 = vld [vmem:[%s5 + $0xb0] sm:$0xff]
    %v830 = vld [vmem:[%s5 + $0xb8] sm:$0xff]
    %v831 = vld [vmem:[%s5 + $0xc0] sm:$0xff]
    %v832 = vld [vmem:[%s5 + $0xc8] sm:$0xff]
    %v833 = vld [vmem:[%s5 + $0xd0] sm:$0xff]
    %v834 = vld [vmem:[%s5 + $0xd8] sm:$0xff]
    %v835 = vld [vmem:[%s5 + $0xe0] sm:$0xff]
    %v836 = vld [vmem:[%s5 + $0xe8] sm:$0xff]
    %v837 = vld [vmem:[%s5 + $0xf0] sm:$0xff]
    %v838 = vld [vmem:[%s5 + $0xf8] sm:$0xff]
    %v839 = vld [vmem:[%s5 + $0x100] sm:$0xff]
    %v840 = vld [vmem:[%s5 + $0x108] sm:$0xff]
    %v841 = vld [vmem:[%s5 + $0x110] sm:$0xff]
    %v842 = vld [vmem:[%s5 + $0x118] sm:$0xff]
    %v843 = vld [vmem:[%s5 + $0x120] sm:$0xff]
    %v844 = vld [vmem:[%s5 + $0x128] sm:$0xff]
    %v845 = vld [vmem:[%s5 + $0x130] sm:$0xff]
    %v846 = vld [vmem:[%s5 + $0x138] sm:$0xff]
    %v847 = vld [vmem:[%s5 + $0x140] sm:$0xff]
    %v848 = vld [vmem:[%s5 + $0x148] sm:$0xff]
    %v849 = vld [vmem:[%s5 + $0x150] sm:$0xff]
    %v850 = vld [vmem:[%s5 + $0x158] sm:$0xff]
    %v851 = vld [vmem:[%s5 + $0x160] sm:$0xff]
    %v852 = vld [vmem:[%s6] sm:$0x1]
    %v854 = vlaneseq
    %v855 = vshrl.u32 %v854, 7
    %v856 = vsub.s32 0, %v855
    %v857 = vrot.slane %v852, %v856
    %vm859 = vcmask 850944
    %v861 = vsel %vm859, %v805, 0
    %v864 = vsel %vm859, %v806, 0
    %866 = vmatprep.subr.mxu0 0.0
    %867 = vmatpush1.msra.mxu0 %v807
    %868 = vmatprep.subr.mxu0 0.0
    %869 = vmatpush1.msra.mxu0 %v808
    %870 = vmatprep.subr.mxu0 0.0
    %871 = vmatpush1.msra.mxu0 %v809
    %872 = vmatprep.subr.mxu0 0.0
    %873 = vmatpush1.msra.mxu0 %v810
    %874 = vmatprep.subr.mxu0 0.0
    %875 = vmatpush1.msra.mxu0 %v811
    %876 = vmatprep.subr.mxu0 0.0
    %877 = vmatpush1.msra.mxu0 %v812
    %878 = vmatprep.subr.mxu0 0.0
    %879 = vmatpush1.msra.mxu0 %v813
    %880 = vmatprep.subr.mxu0 0.0
    %881 = vmatpush1.msra.mxu0 %v814
    %882 = vmatprep.subr.mxu0 0.0
    %883 = vmatpush1.msra.mxu0 %v815
    %884 = vmatprep.subr.mxu0 0.0
    %885 = vmatpush1.msra.mxu0 %v816
    %886 = vmatprep.subr.mxu0 0.0
    %887 = vmatpush1.msra.mxu0 %v817
    %888 = vmatprep.subr.mxu0 0.0
    %889 = vmatpush1.msra.mxu0 %v818
    %890 = vmatprep.subr.mxu0 0.0
    %891 = vmatpush1.msra.mxu0 %v819
    %892 = vmatprep.subr.mxu0 0.0
    %893 = vmatpush1.msra.mxu0 %v820
    %894 = vmatprep.subr.mxu0 0.0
    %895 = vmatpush1.msra.mxu0 %v821
    %896 = vmatprep.subr.mxu0 0.0
    %897 = vmatpush1.msra.mxu0 %v822
    %898 = vmatprep.subr.mxu0 0.0
    %899 = vmatpush1.msra.mxu0 %v823
    %900 = vmatprep.subr.mxu0 0.0
    %901 = vmatpush1.msra.mxu0 %v824
    %902 = vmatprep.subr.mxu0 0.0
    %903 = vmatpush1.msra.mxu0 %v825
    %904 = vmatprep.subr.mxu0 0.0
    %905 = vmatpush1.msra.mxu0 %v826
    %906 = vmatprep.subr.mxu0 0.0
    %907 = vmatpush1.msra.mxu0 %v827
    %908 = vmatprep.subr.mxu0 0.0
    %909 = vmatpush1.msra.mxu0 %v828
    %910 = vmatprep.subr.mxu0 0.0
    %911 = vmatpush1.msra.mxu0 %v829
    %912 = vmatprep.subr.mxu0 0.0
    %913 = vmatpush1.msra.mxu0 %v830
    %914 = vmatprep.subr.mxu0 0.0
    %915 = vmatpush1.msra.mxu0 %v831
    %916 = vmatprep.subr.mxu0 0.0
    %917 = vmatpush1.msra.mxu0 %v832
    %918 = vmatprep.subr.mxu0 0.0
    %919 = vmatpush1.msra.mxu0 %v833
    %920 = vmatprep.subr.mxu0 0.0
    %921 = vmatpush1.msra.mxu0 %v834
    %922 = vmatprep.subr.mxu0 0.0
    %923 = vmatpush1.msra.mxu0 %v835
    %924 = vmatprep.subr.mxu0 0.0
    %925 = vmatpush1.msra.mxu0 %v836
    %926 = vmatprep.subr.mxu0 0.0
    %927 = vmatpush1.msra.mxu0 %v837
    %928 = vmatprep.subr.mxu0 0.0
    %929 = vmatpush1.msra.mxu0 %v838
    %930 = vmatprep.mubr.f32.mxu0 %v802
    %931 = vmatmul.mubr.f32.gmra.mrb[0].mxu0 %v797
    %v932 = vpop.f32.mrb[0].mxu0
    %v933 = vadd.f32 %v857, %v932
    %v934 = vpop.f32.mrb[0].mxu0
    %935 = vmatprep.mubr.f32.mxu0 %v803
    %936 = vmatmul.mubr.f32.gmra.mrb[0].mxu0 %v798
    %v937 = vpop.f32.mrb[0].mxu0
    %v938 = vadd.f32 %v857, %v937
    %v939 = vpop.f32.mrb[0].mxu0
    %940 = vdwg.mxu0
    %941 = vmatprep.subr.mxu0 0.0
    %942 = vmatpush1.msra.mxu0 %v839
    %943 = vmatprep.subr.mxu0 0.0
    %944 = vmatpush1.msra.mxu0 %v840
    %945 = vmatprep.subr.mxu0 0.0
    %946 = vmatpush1.msra.mxu0 %v841
    %947 = vmatprep.subr.mxu0 0.0
    %948 = vmatpush1.msra.mxu0 %v842
    %949 = vmatprep.subr.mxu0 0.0
    %950 = vmatpush1.msra.mxu0 %v843
    %951 = vmatprep.subr.mxu0 0.0
    %952 = vmatpush1.msra.mxu0 %v844
    %953 = vmatprep.subr.mxu0 0.0
    %954 = vmatpush1.msra.mxu0 %v845
    %955 = vmatprep.subr.mxu0 0.0
    %956 = vmatpush1.msra.mxu0 %v846
    %957 = vmatprep.subr.mxu0 0.0
    %958 = vmatpush1.msra.mxu0 %v847
    %959 = vmatprep.subr.mxu0 0.0
    %960 = vmatpush1.msra.mxu0 %v848
    %961 = vmatprep.subr.mxu0 0.0
    %962 = vmatpush1.msra.mxu0 %v849
    %963 = vmatprep.subr.mxu0 0.0
    %964 = vmatpush1.msra.mxu0 %v850
    %965 = vmatprep.subr.mxu0 0.0
    %966 = vmatpush1.msra.mxu0 %v851
    %967 = vmatprep.subr.mxu0 0.0
    %968 = vmatpush1.msra.mxu0 0.0
    %969 = vmatprep.subr.mxu0 0.0
    %970 = vmatpush1.msra.mxu0 0.0
    %971 = vmatprep.subr.mxu0 0.0
    %972 = vmatpush1.msra.mxu0 0.0
    %973 = vmatprep.subr.mxu0 0.0
    %974 = vmatpush1.msra.mxu0 0.0
    %975 = vmatprep.subr.mxu0 0.0
    %976 = vmatpush1.msra.mxu0 0.0
    %977 = vmatprep.subr.mxu0 0.0
    %978 = vmatpush1.msra.mxu0 0.0
    %979 = vmatprep.subr.mxu0 0.0
    %980 = vmatpush1.msra.mxu0 0.0
    %981 = vmatprep.subr.mxu0 0.0
    %982 = vmatpush1.msra.mxu0 0.0
    %983 = vmatprep.subr.mxu0 0.0
    %984 = vmatpush1.msra.mxu0 0.0
    %985 = vmatprep.subr.mxu0 0.0
    %986 = vmatpush1.msra.mxu0 0.0
    %987 = vmatprep.subr.mxu0 0.0
    %988 = vmatpush1.msra.mxu0 0.0
    %989 = vmatprep.subr.mxu0 0.0
    %990 = vmatpush1.msra.mxu0 0.0
    %991 = vmatprep.subr.mxu0 0.0
    %992 = vmatpush1.msra.mxu0 0.0
    %993 = vmatprep.subr.mxu0 0.0
    %994 = vmatpush1.msra.mxu0 0.0
    %995 = vmatprep.subr.mxu0 0.0
    %996 = vmatpush1.msra.mxu0 0.0
    %997 = vmatprep.subr.mxu0 0.0
    %998 = vmatpush1.msra.mxu0 0.0
    %999 = vmatprep.subr.mxu0 0.0
    %1000 = vmatpush1.msra.mxu0 0.0
    %1001 = vmatprep.subr.mxu0 0.0
    %1002 = vmatpush1.msra.mxu0 0.0
    %1003 = vmatprep.subr.mxu0 0.0
    %1004 = vmatpush1.msra.mxu0 0.0
    %1005 = vmatprep.mubr.f32.mxu0 0.0
    %1006 = vmatmul.mubr.f32.gmra.mrb[0].mxu0 %v861
    %v1007 = vpop.f32.mrb[0].mxu0
    %v1008 = vadd.f32 %v933, %v1007
    %v1009 = vpop.f32.mrb[0].mxu0
    %1010 = vmatprep.mubr.f32.mxu0 0.0
    %1011 = vmatmul.mubr.f32.gmra.mrb[0].mxu0 %v864
    %v1012 = vpop.f32.mrb[0].mxu0
    %v1013 = vadd.f32 %v938, %v1012
    %v1014 = vpop.f32.mrb[0].mxu0
    %1015 = vdwg.mxu0
    %v1016 = vmax.f32 %v1008, 0.0
    %v1017 = vmax.f32 %v1013, 0.0
    %v1018 = vld [vmem:[%s7] sm:$0xff]
    %v1019 = vld [vmem:[%s7 + $0x8] sm:$0xff]
    %v1020 = vld [vmem:[%s7 + $0x10] sm:$0xff]
    %v1021 = vld [vmem:[%s7 + $0x18] sm:$0xff]
    %v1022 = vld [vmem:[%s7 + $0x20] sm:$0xff]
    %v1023 = vld [vmem:[%s7 + $0x28] sm:$0xff]
    %v1024 = vld [vmem:[%s7 + $0x30] sm:$0xff]
    %v1025 = vld [vmem:[%s7 + $0x38] sm:$0xff]
    %v1026 = vld [vmem:[%s7 + $0x40] sm:$0xff]
    %v1027 = vld [vmem:[%s7 + $0x48] sm:$0xff]
    %v1028 = vld [vmem:[%s7 + $0x50] sm:$0xff]
    %v1029 = vld [vmem:[%s7 + $0x58] sm:$0xff]
    %vm1030 = vcmask 785408
    %v1032 = vsel %vm1030, %v1016, 0
    %v1035 = vsel %vm1030, %v1017, 0
    %1037 = vmatprep.subr.mxu0 0.0
    %1038 = vmatpush1.msra.mxu0 %v1018
    %1039 = vmatprep.subr.mxu0 0.0
    %1040 = vmatpush1.msra.mxu0 %v1019
    %1041 = vmatprep.subr.mxu0 0.0
    %1042 = vmatpush1.msra.mxu0 %v1020
    %1043 = vmatprep.subr.mxu0 0.0
    %1044 = vmatpush1.msra.mxu0 %v1021
    %1045 = vmatprep.subr.mxu0 0.0
    %1046 = vmatpush1.msra.mxu0 %v1022
    %1047 = vmatprep.subr.mxu0 0.0
    %1048 = vmatpush1.msra.mxu0 %v1023
    %1049 = vmatprep.subr.mxu0 0.0
    %1050 = vmatpush1.msra.mxu0 %v1024
    %1051 = vmatprep.subr.mxu0 0.0
    %1052 = vmatpush1.msra.mxu0 %v1025
    %1053 = vmatprep.subr.mxu0 0.0
    %1054 = vmatpush1.msra.mxu0 %v1026
    %1055 = vmatprep.subr.mxu0 0.0
    %1056 = vmatpush1.msra.mxu0 %v1027
    %1057 = vmatprep.subr.mxu0 0.0
    %1058 = vmatpush1.msra.mxu0 %v1028
    %1059 = vmatprep.subr.mxu0 0.0
    %1060 = vmatpush1.msra.mxu0 %v1029
    %1061 = vmatprep.subr.mxu0 0.0
    %1062 = vmatpush1.msra.mxu0 0.0
    %1063 = vmatprep.subr.mxu0 0.0
    %1064 = vmatpush1.msra.mxu0 0.0
    %1065 = vmatprep.subr.mxu0 0.0
    %1066 = vmatpush1.msra.mxu0 0.0
    %1067 = vmatprep.subr.mxu0 0.0
    %1068 = vmatpush1.msra.mxu0 0.0
    %1069 = vmatprep.subr.mxu0 0.0
    %1070 = vmatpush1.msra.mxu0 0.0
    %1071 = vmatprep.subr.mxu0 0.0
    %1072 = vmatpush1.msra.mxu0 0.0
    %1073 = vmatprep.subr.mxu0 0.0
    %1074 = vmatpush1.msra.mxu0 0.0
    %1075 = vmatprep.subr.mxu0 0.0
    %1076 = vmatpush1.msra.mxu0 0.0
    %1077 = vmatprep.subr.mxu0 0.0
    %1078 = vmatpush1.msra.mxu0 0.0
    %1079 = vmatprep.subr.mxu0 0.0
    %1080 = vmatpush1.msra.mxu0 0.0
    %1081 = vmatprep.subr.mxu0 0.0
    %1082 = vmatpush1.msra.mxu0 0.0
    %1083 = vmatprep.subr.mxu0 0.0
    %1084 = vmatpush1.msra.mxu0 0.0
    %1085 = vmatprep.subr.mxu0 0.0
    %1086 = vmatpush1.msra.mxu0 0.0
    %1087 = vmatprep.subr.mxu0 0.0
    %1088 = vmatpush1.msra.mxu0 0.0
    %1089 = vmatprep.subr.mxu0 0.0
    %1090 = vmatpush1.msra.mxu0 0.0
    %1091 = vmatprep.subr.mxu0 0.0
    %1092 = vmatpush1.msra.mxu0 0.0
    %1093 = vmatprep.subr.mxu0 0.0
    %1094 = vmatpush1.msra.mxu0 0.0
    %1095 = vmatprep.subr.mxu0 0.0
    %1096 = vmatpush1.msra.mxu0 0.0
    %1097 = vmatprep.subr.mxu0 0.0
    %1098 = vmatpush1.msra.mxu0 0.0
    %1099 = vmatprep.subr.mxu0 0.0
    %1100 = vmatpush1.msra.mxu0 0.0
    %1101 = vmatprep.mubr.f32.mxu0 0.0
    %1102 = vmatmul.mubr.f32.gmra.mrb[0].mxu0 %v1032
    %v1103 = vpop.f32.mrb[0].mxu0
    %v1104 = vadd.f32 0.0, %v1103
    %v1105 = vpop.f32.mrb[0].mxu0
    %1106 = vmatprep.mubr.f32.mxu0 0.0
    %1107 = vmatmul.mubr.f32.gmra.mrb[0].mxu0 %v1035
    %v1108 = vpop.f32.mrb[0].mxu0
    %v1109 = vadd.f32 0.0, %v1108
    %v1110 = vpop.f32.mrb[0].mxu0
    %1111 = vdwg.mxu0
    %v1112 = vld [vmem:[%s8] sm:$0xff]
    %v1113 = vld [vmem:[%s8 + $0x8] sm:$0xff]
    %v1114 = vld [vmem:[%s8 + $0x10] sm:$0xff]
    %v1115 = vld [vmem:[%s8 + $0x18] sm:$0xff]
    %v1116 = vld [vmem:[%s8 + $0x20] sm:$0xff]
    %v1117 = vld [vmem:[%s8 + $0x28] sm:$0xff]
    %v1118 = vld [vmem:[%s8 + $0x30] sm:$0xff]
    %v1119 = vld [vmem:[%s8 + $0x38] sm:$0xff]
    %v1120 = vld [vmem:[%s8 + $0x40] sm:$0xff]
    %v1121 = vld [vmem:[%s8 + $0x48] sm:$0xff]
    %v1122 = vld [vmem:[%s8 + $0x50] sm:$0xff]
    %v1123 = vld [vmem:[%s8 + $0x58] sm:$0xff]
    %1124 = vmatprep.subr.mxu0 0.0
    %1125 = vmatpush1.msra.mxu0 %v1112
    %1126 = vmatprep.subr.mxu0 0.0
    %1127 = vmatpush1.msra.mxu0 %v1113
    %1128 = vmatprep.subr.mxu0 0.0
    %1129 = vmatpush1.msra.mxu0 %v1114
    %1130 = vmatprep.subr.mxu0 0.0
    %1131 = vmatpush1.msra.mxu0 %v1115
    %1132 = vmatprep.subr.mxu0 0.0
    %1133 = vmatpush1.msra.mxu0 %v1116
    %1134 = vmatprep.subr.mxu0 0.0
    %1135 = vmatpush1.msra.mxu0 %v1117
    %1136 = vmatprep.subr.mxu0 0.0
    %1137 = vmatpush1.msra.mxu0 %v1118
    %1138 = vmatprep.subr.mxu0 0.0
    %1139 = vmatpush1.msra.mxu0 %v1119
    %1140 = vmatprep.subr.mxu0 0.0
    %1141 = vmatpush1.msra.mxu0 %v1120
    %1142 = vmatprep.subr.mxu0 0.0
    %1143 = vmatpush1.msra.mxu0 %v1121
    %1144 = vmatprep.subr.mxu0 0.0
    %1145 = vmatpush1.msra.mxu0 %v1122
    %1146 = vmatprep.subr.mxu0 0.0
    %1147 = vmatpush1.msra.mxu0 %v1123
    %1148 = vmatprep.subr.mxu0 0.0
    %1149 = vmatpush1.msra.mxu0 0.0
    %1150 = vmatprep.subr.mxu0 0.0
    %1151 = vmatpush1.msra.mxu0 0.0
    %1152 = vmatprep.subr.mxu0 0.0
    %1153 = vmatpush1.msra.mxu0 0.0
    %1154 = vmatprep.subr.mxu0 0.0
    %1155 = vmatpush1.msra.mxu0 0.0
    %1156 = vmatprep.subr.mxu0 0.0
    %1157 = vmatpush1.msra.mxu0 0.0
    %1158 = vmatprep.subr.mxu0 0.0
    %1159 = vmatpush1.msra.mxu0 0.0
    %1160 = vmatprep.subr.mxu0 0.0
    %1161 = vmatpush1.msra.mxu0 0.0
    %1162 = vmatprep.subr.mxu0 0.0
    %1163 = vmatpush1.msra.mxu0 0.0
    %1164 = vmatprep.subr.mxu0 0.0
    %1165 = vmatpush1.msra.mxu0 0.0
    %1166 = vmatprep.subr.mxu0 0.0
    %1167 = vmatpush1.msra.mxu0 0.0
    %1168 = vmatprep.subr.mxu0 0.0
    %1169 = vmatpush1.msra.mxu0 0.0
    %1170 = vmatprep.subr.mxu0 0.0
    %1171 = vmatpush1.msra.mxu0 0.0
    %1172 = vmatprep.subr.mxu0 0.0
    %1173 = vmatpush1.msra.mxu0 0.0
    %1174 = vmatprep.subr.mxu0 0.0
    %1175 = vmatpush1.msra.mxu0 0.0
    %1176 = vmatprep.subr.mxu0 0.0
    %1177 = vmatpush1.msra.mxu0 0.0
    %1178 = vmatprep.subr.mxu0 0.0
    %1179 = vmatpush1.msra.mxu0 0.0
    %1180 = vmatprep.subr.mxu0 0.0
    %1181 = vmatpush1.msra.mxu0 0.0
    %1182 = vmatprep.subr.mxu0 0.0
    %1183 = vmatpush1.msra.mxu0 0.0
    %1184 = vmatprep.subr.mxu0 0.0
    %1185 = vmatpush1.msra.mxu0 0.0
    %1186 = vmatprep.subr.mxu0 0.0
    %1187 = vmatpush1.msra.mxu0 0.0
    %1188 = vmatprep.mubr.f32.mxu0 0.0
    %1189 = vmatmul.mubr.f32.gmra.mrb[0].mxu0 %v1032
    %v1190 = vpop.f32.mrb[0].mxu0
    %v1191 = vadd.f32 0.0, %v1190
    %v1192 = vpop.f32.mrb[0].mxu0
    %1193 = vmatprep.mubr.f32.mxu0 0.0
    %1194 = vmatmul.mubr.f32.gmra.mrb[0].mxu0 %v1035
    %v1195 = vpop.f32.mrb[0].mxu0
    %v1196 = vadd.f32 0.0, %v1195
    %v1197 = vpop.f32.mrb[0].mxu0
    %1198 = vdwg.mxu0
    %v1199 = vmax.f32 %v1104, %v1191
    %v1200 = vmax.f32 %v1109, %v1196
    %vm1201 = vcmask 392192
    %1202 = vst.msk [vmem:[#allocation4] sm:$0xff] %vm1201, %v1199
    %1203 = vst.msk [vmem:[#allocation4 + $0x8] sm:$0xff] %vm1201, %v1200
    %v1204 = vld [vmem:[#allocation4] sm:$0x1]
    %v1205 = vld [vmem:[#allocation4 + $0x8] sm:$0x1]
    %v1206 = vld [vmem:[#allocation4 + $0x1] sm:$0x1]
    %v1207 = vld [vmem:[#allocation4 + $0x9] sm:$0x1]
    %v1208 = vmax.f32 %v1204, %v1206
    %v1209 = vmax.f32 %v1205, %v1207
    %v1210 = vld [vmem:[#allocation4 + $0x2] sm:$0x1]
    %v1211 = vld [vmem:[#allocation4 + $0xa] sm:$0x1]
    %v1212 = vld [vmem:[#allocation4 + $0x3] sm:$0x1]
    %v1213 = vld [vmem:[#allocation4 + $0xb] sm:$0x1]
    %v1214 = vmax.f32 %v1210, %v1212
    %v1215 = vmax.f32 %v1211, %v1213
    %v1216 = vld [vmem:[#allocation4 + $0x4] sm:$0x1]
    %v1217 = vld [vmem:[#allocation4 + $0xc] sm:$0x1]
    %v1218 = vld [vmem:[#allocation4 + $0x5] sm:$0x1]
    %v1219 = vld [vmem:[#allocation4 + $0xd] sm:$0x1]
    %v1220 = vmax.f32 %v1216, %v1218
    %v1221 = vmax.f32 %v1217, %v1219
    %v1222 = vld [vmem:[#allocation4 + $0x6] sm:$0x1]
    %v1223 = vld [vmem:[#allocation4 + $0xe] sm:$0x1]
    %v1224 = vld [vmem:[#allocation4 + $0x7] sm:$0x1]
    %v1225 = vld [vmem:[#allocation4 + $0xf] sm:$0x1]
    %v1226 = vmax.f32 %v1222, %v1224
    %v1227 = vmax.f32 %v1223, %v1225
    %v1230 = vrot.slane %v1209, 7
    %vm1231 = vcmask 1041409
    %v1232 = vsel %vm1231, %v1230, %v1208
    %v1236 = vrot.slane %v1215, 7
    %v1237 = vsel %vm1231, %v1236, %v1214
    %1238 = vrot.lane.b32.xlu0 %v1237, 48
    %v1239 = vpop.permute.xlu0 %1238
    %v1243 = vrot.slane %v1221, 7
    %v1244 = vsel %vm1231, %v1243, %v1220
    %1245 = vrot.lane.b32.xlu0 %v1244, 96
    %v1246 = vpop.permute.xlu0 %1245
    %v1250 = vrot.slane %v1227, 7
    %v1251 = vsel %vm1231, %v1250, %v1226
    %1252 = vrot.lane.b32.xlu0 %v1251, 16
    %v1253 = vpop.permute.xlu0 %1252
    %v1255 = vsel %vm1201, %v1232, %v1239
    %v1256 = vsel %vm1030, %v1255, %v1246
    %v1257 = vsel %vm418, %v1246, %v1253
    %v1258 = vld [vmem:[%s9] sm:$0xff]
    %v1259 = vld [vmem:[%s9 + $0x8] sm:$0xff]
    %v1260 = vld [vmem:[%s9 + $0x10] sm:$0xff]
    %v1261 = vld [vmem:[%s9 + $0x18] sm:$0xff]
    %v1262 = vld [vmem:[%s9 + $0x20] sm:$0xff]
    %v1263 = vld [vmem:[%s9 + $0x28] sm:$0xff]
    %v1264 = vld [vmem:[%s9 + $0x30] sm:$0xff]
    %v1265 = vld [vmem:[%s9 + $0x38] sm:$0xff]
    %v1266 = vld [vmem:[%s9 + $0x40] sm:$0xff]
    %v1267 = vld [vmem:[%s9 + $0x48] sm:$0xff]
    %v1268 = vld [vmem:[%s9 + $0x50] sm:$0xff]
    %v1269 = vld [vmem:[%s9 + $0x58] sm:$0xff]
    %v1270 = vld [vmem:[%s9 + $0x60] sm:$0xff]
    %v1271 = vld [vmem:[%s9 + $0x68] sm:$0xff]
    %v1272 = vld [vmem:[%s9 + $0x70] sm:$0xff]
    %v1273 = vld [vmem:[%s9 + $0x78] sm:$0xff]
    %v1274 = vld [vmem:[%s9 + $0x80] sm:$0xff]
    %v1275 = vld [vmem:[%s9 + $0x88] sm:$0xff]
    %v1276 = vld [vmem:[%s9 + $0x90] sm:$0xff]
    %v1277 = vld [vmem:[%s9 + $0x98] sm:$0xff]
    %v1278 = vld [vmem:[%s9 + $0xa0] sm:$0xff]
    %v1279 = vld [vmem:[%s9 + $0xa8] sm:$0xff]
    %v1280 = vld [vmem:[%s9 + $0xb0] sm:$0xff]
    %v1281 = vld [vmem:[%s9 + $0xb8] sm:$0xff]
    %v1282 = vld [vmem:[%s10] sm:$0x1]
    %v1284 = vlaneseq
    %v1285 = vshrl.u32 %v1284, 7
    %v1286 = vsub.s32 0, %v1285
    %v1287 = vrot.slane %v1282, %v1286
    %vm1289 = vcmask 523264
    %v1291 = vsel %vm1289, %v1257, 0
    %1293 = vmatprep.subr.mxu0 0.0
    %1294 = vmatpush1.msra.mxu0 %v1258
    %1295 = vmatprep.subr.mxu0 0.0
    %1296 = vmatpush1.msra.mxu0 %v1259
    %1297 = vmatprep.subr.mxu0 0.0
    %1298 = vmatpush1.msra.mxu0 %v1260
    %1299 = vmatprep.subr.mxu0 0.0
    %1300 = vmatpush1.msra.mxu0 %v1261
    %1301 = vmatprep.subr.mxu0 0.0
    %1302 = vmatpush1.msra.mxu0 %v1262
    %1303 = vmatprep.subr.mxu0 0.0
    %1304 = vmatpush1.msra.mxu0 %v1263
    %1305 = vmatprep.subr.mxu0 0.0
    %1306 = vmatpush1.msra.mxu0 %v1264
    %1307 = vmatprep.subr.mxu0 0.0
    %1308 = vmatpush1.msra.mxu0 %v1265
    %1309 = vmatprep.subr.mxu0 0.0
    %1310 = vmatpush1.msra.mxu0 %v1266
    %1311 = vmatprep.subr.mxu0 0.0
    %1312 = vmatpush1.msra.mxu0 %v1267
    %1313 = vmatprep.subr.mxu0 0.0
    %1314 = vmatpush1.msra.mxu0 %v1268
    %1315 = vmatprep.subr.mxu0 0.0
    %1316 = vmatpush1.msra.mxu0 %v1269
    %1317 = vmatprep.subr.mxu0 0.0
    %1318 = vmatpush1.msra.mxu0 %v1270
    %1319 = vmatprep.subr.mxu0 0.0
    %1320 = vmatpush1.msra.mxu0 %v1271
    %1321 = vmatprep.subr.mxu0 0.0
    %1322 = vmatpush1.msra.mxu0 %v1272
    %1323 = vmatprep.subr.mxu0 0.0
    %1324 = vmatpush1.msra.mxu0 %v1273
    %1325 = vmatprep.subr.mxu0 0.0
    %1326 = vmatpush1.msra.mxu0 %v1274
    %1327 = vmatprep.subr.mxu0 0.0
    %1328 = vmatpush1.msra.mxu0 %v1275
    %1329 = vmatprep.subr.mxu0 0.0
    %1330 = vmatpush1.msra.mxu0 %v1276
    %1331 = vmatprep.subr.mxu0 0.0
    %1332 = vmatpush1.msra.mxu0 %v1277
    %1333 = vmatprep.subr.mxu0 0.0
    %1334 = vmatpush1.msra.mxu0 %v1278
    %1335 = vmatprep.subr.mxu0 0.0
    %1336 = vmatpush1.msra.mxu0 %v1279
    %1337 = vmatprep.subr.mxu0 0.0
    %1338 = vmatpush1.msra.mxu0 %v1280
    %1339 = vmatprep.subr.mxu0 0.0
    %1340 = vmatpush1.msra.mxu0 %v1281
    %1341 = vmatprep.subr.mxu0 0.0
    %1342 = vmatpush1.msra.mxu0 0.0
    %1343 = vmatprep.subr.mxu0 0.0
    %1344 = vmatpush1.msra.mxu0 0.0
    %1345 = vmatprep.subr.mxu0 0.0
    %1346 = vmatpush1.msra.mxu0 0.0
    %1347 = vmatprep.subr.mxu0 0.0
    %1348 = vmatpush1.msra.mxu0 0.0
    %1349 = vmatprep.subr.mxu0 0.0
    %1350 = vmatpush1.msra.mxu0 0.0
    %1351 = vmatprep.subr.mxu0 0.0
    %1352 = vmatpush1.msra.mxu0 0.0
    %1353 = vmatprep.subr.mxu0 0.0
    %1354 = vmatpush1.msra.mxu0 0.0
    %1355 = vmatprep.subr.mxu0 0.0
    %1356 = vmatpush1.msra.mxu0 0.0
    %1357 = vmatprep.mubr.f32.mxu0 %v1291
    %1358 = vmatmul.mubr.f32.gmra.mrb[0].mxu0 %v1256
    %v1359 = vpop.f32.mrb[0].mxu0
    %v1360 = vadd.f32 %v1287, %v1359
    %v1361 = vpop.f32.mrb[0].mxu0
    %1362 = vdwg.mxu0
    %v1363 = vmax.f32 %v1360, 0.0
    %v1364 = vld [vmem:[%s11] sm:$0xff]
    %v1365 = vld [vmem:[%s11 + $0x8] sm:$0xff]
    %v1366 = vld [vmem:[%s11 + $0x10] sm:$0xff]
    %v1367 = vld [vmem:[%s11 + $0x18] sm:$0xff]
    %v1368 = vld [vmem:[%s11 + $0x20] sm:$0xff]
    %v1369 = vld [vmem:[%s11 + $0x28] sm:$0xff]
    %v1370 = vld [vmem:[%s11 + $0x30] sm:$0xff]
    %v1371 = vld [vmem:[%s11 + $0x38] sm:$0xff]
    %v1372 = vld [vmem:[%s11 + $0x40] sm:$0xff]
    %v1373 = vld [vmem:[%s11 + $0x48] sm:$0xff]
    %v1374 = vld [vmem:[%s11 + $0x50] sm:$0xff]
    %v1375 = vld [vmem:[%s11 + $0x58] sm:$0xff]
    %v1376 = vld [vmem:[%s11 + $0x60] sm:$0xff]
    %v1377 = vld [vmem:[%s11 + $0x68] sm:$0xff]
    %v1378 = vld [vmem:[%s11 + $0x70] sm:$0xff]
    %v1379 = vld [vmem:[%s11 + $0x78] sm:$0xff]
    %v1380 = vld [vmem:[%s12] sm:$0x1]
    %v1382 = vlaneseq
    %v1383 = vshrl.u32 %v1382, 7
    %v1384 = vsub.s32 0, %v1383
    %v1385 = vrot.slane %v1380, %v1384
    %1387 = vmatprep.subr.mxu0 0.0
    %1388 = vmatpush1.msra.mxu0 %v1364
    %1389 = vmatprep.subr.mxu0 0.0
    %1390 = vmatpush1.msra.mxu0 %v1365
    %1391 = vmatprep.subr.mxu0 0.0
    %1392 = vmatpush1.msra.mxu0 %v1366
    %1393 = vmatprep.subr.mxu0 0.0
    %1394 = vmatpush1.msra.mxu0 %v1367
    %1395 = vmatprep.subr.mxu0 0.0
    %1396 = vmatpush1.msra.mxu0 %v1368
    %1397 = vmatprep.subr.mxu0 0.0
    %1398 = vmatpush1.msra.mxu0 %v1369
    %1399 = vmatprep.subr.mxu0 0.0
    %1400 = vmatpush1.msra.mxu0 %v1370
    %1401 = vmatprep.subr.mxu0 0.0
    %1402 = vmatpush1.msra.mxu0 %v1371
    %1403 = vmatprep.subr.mxu0 0.0
    %1404 = vmatpush1.msra.mxu0 %v1372
    %1405 = vmatprep.subr.mxu0 0.0
    %1406 = vmatpush1.msra.mxu0 %v1373
    %1407 = vmatprep.subr.mxu0 0.0
    %1408 = vmatpush1.msra.mxu0 %v1374
    %1409 = vmatprep.subr.mxu0 0.0
    %1410 = vmatpush1.msra.mxu0 %v1375
    %1411 = vmatprep.subr.mxu0 0.0
    %1412 = vmatpush1.msra.mxu0 %v1376
    %1413 = vmatprep.subr.mxu0 0.0
    %1414 = vmatpush1.msra.mxu0 %v1377
    %1415 = vmatprep.subr.mxu0 0.0
    %1416 = vmatpush1.msra.mxu0 %v1378
    %1417 = vmatprep.subr.mxu0 0.0
    %1418 = vmatpush1.msra.mxu0 %v1379
    %1419 = vmatprep.subr.mxu0 0.0
    %1420 = vmatpush1.msra.mxu0 0.0
    %1421 = vmatprep.subr.mxu0 0.0
    %1422 = vmatpush1.msra.mxu0 0.0
    %1423 = vmatprep.subr.mxu0 0.0
    %1424 = vmatpush1.msra.mxu0 0.0
    %1425 = vmatprep.subr.mxu0 0.0
    %1426 = vmatpush1.msra.mxu0 0.0
    %1427 = vmatprep.subr.mxu0 0.0
    %1428 = vmatpush1.msra.mxu0 0.0
    %1429 = vmatprep.subr.mxu0 0.0
    %1430 = vmatpush1.msra.mxu0 0.0
    %1431 = vmatprep.subr.mxu0 0.0
    %1432 = vmatpush1.msra.mxu0 0.0
    %1433 = vmatprep.subr.mxu0 0.0
    %1434 = vmatpush1.msra.mxu0 0.0
    %1435 = vmatprep.subr.mxu0 0.0
    %1436 = vmatpush1.msra.mxu0 0.0
    %1437 = vmatprep.subr.mxu0 0.0
    %1438 = vmatpush1.msra.mxu0 0.0
    %1439 = vmatprep.subr.mxu0 0.0
    %1440 = vmatpush1.msra.mxu0 0.0
    %1441 = vmatprep.subr.mxu0 0.0
    %1442 = vmatpush1.msra.mxu0 0.0
    %1443 = vmatprep.subr.mxu0 0.0
    %1444 = vmatpush1.msra.mxu0 0.0
    %1445 = vmatprep.subr.mxu0 0.0
    %1446 = vmatpush1.msra.mxu0 0.0
    %1447 = vmatprep.subr.mxu0 0.0
    %1448 = vmatpush1.msra.mxu0 0.0
    %1449 = vmatprep.subr.mxu0 0.0
    %1450 = vmatpush1.msra.mxu0 0.0
    %1451 = vmatprep.mubr.f32.mxu0 0.0
    %1452 = vmatmul.mubr.f32.gmra.mrb[0].mxu0 %v1363
    %v1453 = vpop.f32.mrb[0].mxu0
    %v1454 = vadd.f32 %v1385, %v1453
    %v1455 = vpop.f32.mrb[0].mxu0
    %1456 = vdwg.mxu0
    %v1457 = vmax.f32 %v1454, 0.0
    %v1458 = vld [vmem:[#allocation5] sm:$0xff]
    %v1459 = vld [vmem:[#allocation5 + $0x8] sm:$0xff]
    %v1460 = vld [vmem:[#allocation5 + $0x10] sm:$0xff]
    %v1461 = vld [vmem:[#allocation5 + $0x18] sm:$0xff]
    %v1462 = vld [vmem:[#allocation5 + $0x20] sm:$0xff]
    %v1463 = vld [vmem:[#allocation5 + $0x28] sm:$0xff]
    %v1464 = vld [vmem:[#allocation5 + $0x30] sm:$0xff]
    %v1465 = vld [vmem:[#allocation5 + $0x38] sm:$0xff]
    %v1466 = vld [vmem:[#allocation5 + $0x40] sm:$0xff]
    %v1467 = vld [vmem:[#allocation5 + $0x48] sm:$0xff]
    %v1468 = vld [vmem:[#allocation5 + $0x50] sm:$0xff]
    %v1469 = vld [vmem:[#allocation5 + $0x58] sm:$0xff]
    %v1470 = vld [vmem:[#allocation5 + $0x60] sm:$0xff]
    %v1471 = vld [vmem:[#allocation5 + $0x68] sm:$0xff]
    %v1472 = vld [vmem:[#allocation5 + $0x70] sm:$0xff]
    %v1473 = vld [vmem:[#allocation5 + $0x78] sm:$0xff]
    %v1474 = vld [vmem:[%s14] sm:$0x1]
    %v1476 = vlaneseq
    %v1477 = vshrl.u32 %v1476, 7
    %v1478 = vsub.s32 0, %v1477
    %v1479 = vrot.slane %v1474, %v1478
    %1481 = vmatprep.subr.mxu0 0.0
    %1482 = vmatpush1.msra.mxu0 %v1458
    %1483 = vmatprep.subr.mxu0 0.0
    %1484 = vmatpush1.msra.mxu0 %v1459
    %1485 = vmatprep.subr.mxu0 0.0
    %1486 = vmatpush1.msra.mxu0 %v1460
    %1487 = vmatprep.subr.mxu0 0.0
    %1488 = vmatpush1.msra.mxu0 %v1461
    %1489 = vmatprep.subr.mxu0 0.0
    %1490 = vmatpush1.msra.mxu0 %v1462
    %1491 = vmatprep.subr.mxu0 0.0
    %1492 = vmatpush1.msra.mxu0 %v1463
    %1493 = vmatprep.subr.mxu0 0.0
    %1494 = vmatpush1.msra.mxu0 %v1464
    %1495 = vmatprep.subr.mxu0 0.0
    %1496 = vmatpush1.msra.mxu0 %v1465
    %1497 = vmatprep.subr.mxu0 0.0
    %1498 = vmatpush1.msra.mxu0 %v1466
    %1499 = vmatprep.subr.mxu0 0.0
    %1500 = vmatpush1.msra.mxu0 %v1467
    %1501 = vmatprep.subr.mxu0 0.0
    %1502 = vmatpush1.msra.mxu0 %v1468
    %1503 = vmatprep.subr.mxu0 0.0
    %1504 = vmatpush1.msra.mxu0 %v1469
    %1505 = vmatprep.subr.mxu0 0.0
    %1506 = vmatpush1.msra.mxu0 %v1470
    %1507 = vmatprep.subr.mxu0 0.0
    %1508 = vmatpush1.msra.mxu0 %v1471
    %1509 = vmatprep.subr.mxu0 0.0
    %1510 = vmatpush1.msra.mxu0 %v1472
    %1511 = vmatprep.subr.mxu0 0.0
    %1512 = vmatpush1.msra.mxu0 %v1473
    %1513 = vmatprep.subr.mxu0 0.0
    %1514 = vmatpush1.msra.mxu0 0.0
    %1515 = vmatprep.subr.mxu0 0.0
    %1516 = vmatpush1.msra.mxu0 0.0
    %1517 = vmatprep.subr.mxu0 0.0
    %1518 = vmatpush1.msra.mxu0 0.0
    %1519 = vmatprep.subr.mxu0 0.0
    %1520 = vmatpush1.msra.mxu0 0.0
    %1521 = vmatprep.subr.mxu0 0.0
    %1522 = vmatpush1.msra.mxu0 0.0
    %1523 = vmatprep.subr.mxu0 0.0
    %1524 = vmatpush1.msra.mxu0 0.0
    %1525 = vmatprep.subr.mxu0 0.0
    %1526 = vmatpush1.msra.mxu0 0.0
    %1527 = vmatprep.subr.mxu0 0.0
    %1528 = vmatpush1.msra.mxu0 0.0
    %1529 = vmatprep.subr.mxu0 0.0
    %1530 = vmatpush1.msra.mxu0 0.0
    %1531 = vmatprep.subr.mxu0 0.0
    %1532 = vmatpush1.msra.mxu0 0.0
    %1533 = vmatprep.subr.mxu0 0.0
    %1534 = vmatpush1.msra.mxu0 0.0
    %1535 = vmatprep.subr.mxu0 0.0
    %1536 = vmatpush1.msra.mxu0 0.0
    %1537 = vmatprep.subr.mxu0 0.0
    %1538 = vmatpush1.msra.mxu0 0.0
    %1539 = vmatprep.subr.mxu0 0.0
    %1540 = vmatpush1.msra.mxu0 0.0
    %1541 = vmatprep.subr.mxu0 0.0
    %1542 = vmatpush1.msra.mxu0 0.0
    %1543 = vmatprep.subr.mxu0 0.0
    %1544 = vmatpush1.msra.mxu0 0.0
    %1545 = vmatprep.mubr.f32.mxu0 0.0
    %1546 = vmatmul.mubr.f32.gmra.mrb[0].mxu0 %v1457
    %v1547 = vpop.f32.mrb[0].mxu0
    %v1548 = vadd.f32 %v1479, %v1547
    %v1549 = vpop.f32.mrb[0].mxu0
    %1550 = vdwg.mxu0
    %1551 = vst [vmem:[#allocation8] sm:$0x3] %v1548
    // Predicated region
    $region66: #{network_forward.1} parent=1 // pred_check
      _
    $region67: #{network_forward.1} parent=1 // pred_check_branch
      %1553 = sbr.rel (0) target = $region69
    $region68: #{network_forward.1} parent=1 // pred_region
      %s1555 = ssub.s32 32, 32
      %1556 = vsyncadd [#allocation7], %s1555
      %s1558 = sshll.u32 [#allocation8], 4
      %s1559 = int_to_ptr.vmem [resolvable:$true] %s1558
      %1561 = dma.vmem_to_hbm [thread:$0]  %s1559, 32, %s15, [#allocation7]
    $region69: #{network_forward.1} parent=1 // pred_fallthru
      _
    // Predicated region
    $region70: #{network_forward.1} parent=1 // pred_check
      _
    $region71: #{network_forward.1} parent=1 // pred_check_branch
      %1563 = sbr.rel (0) target = $region73
    $region72: #{network_forward.1} parent=1 // pred_region
      %1564 = dma.done [#allocation7], 32
    $region73: #{network_forward.1} parent=1 // pred_fallthru
      _
    %1565 = vsyncpa [#allocation6], 1
    %1566 = vsyncpa [#allocation7], 1

</llo_original>
